<compile_context>
chip_gen: v5e
topology: v5e:2x2
jax: 0.10.0
libtpu: 0.0.40
codegen_flags: <defaults>
</compile_context>

<pallas_src>
import jax
import jax.numpy as jnp
from jax.experimental import pallas as pl
from jax.experimental.pallas import tpu as pltpu

EPS = 1e-5  # PyTorch BatchNorm1d default eps


# ----------------------------------------------------------------------------
# Fused kernel: point MLP + running max-pool + head.
# Grid = (batch tiles [parallel], point tiles [arbitrary]).
# ----------------------------------------------------------------------------
def _fused_kernel(obj_ref,                      # SMEM (B,) int32  (scalar prefetch)
                  x_ref,                        # (Bt, Nt, 3)
                  w1, t1, w2, t2, w3, t3,       # point MLP, BN+bias folded
                  hw1a, hw1b, ht1, hw2, ht2,    # head layers 1-2, BN+bias folded
                  w345, b345,                   # head conv3|conv4|conv5 fused (128, 12)
                  out_ref,                      # (Bt, 1, 12)
                  feat_acc):                    # VMEM scratch (Bt, 512) f32
    b = pl.program_id(0)
    k = pl.program_id(1)
    Bt, Nt, _ = x_ref.shape

    @pl.when(k == 0)
    def _():
        feat_acc[...] = jnp.full(feat_acc.shape, -jnp.inf, feat_acc.dtype)

    # ---- point MLP on this (Bt, Nt) tile of points --------------------------------
    x = x_ref[...].reshape(Bt * Nt, 3)
    w1v = w1[...]                                                    # (3, 128)
    # conv1 (K=3): three VPU broadcast FMAs instead of a degenerate MXU matmul.
    h = (x[:, 0:1] * w1v[0:1, :]
         + x[:, 1:2] * w1v[1:2, :]
         + x[:, 2:3] * w1v[2:3, :]) + t1[...]
    h = jnp.maximum(h, 0.0)                                          # (Bt*Nt, 128)
    h = jnp.maximum(
        jnp.dot(h, w2[...], preferred_element_type=jnp.float32) + t2[...], 0.0)
    h = jnp.dot(h, w3[...], preferred_element_type=jnp.float32) + t3[...]   # (Bt*Nt, 512)
    pooled = jnp.max(h.reshape(Bt, Nt, 512), axis=1)                 # max over this point tile
    feat_acc[...] = jnp.maximum(feat_acc[...], pooled)               # running max over N

    # ---- head, once per batch tile (after the last point tile) --------------------
    @pl.when(k == pl.num_programs(1) - 1)
    def _():
        feat = feat_acc[...]                                                        # (Bt, 512)
        h1 = jnp.dot(feat, hw1a[...], preferred_element_type=jnp.float32) + ht1[...]
        # one_hot(obj) @ hw1b  ==  row gather of hw1b, per cloud in the tile
        oh = jnp.concatenate(
            [hw1b[pl.ds(obj_ref[b * Bt + i], 1), :] for i in range(Bt)], axis=0)
        h1 = jnp.maximum(h1 + oh, 0.0)                                              # (Bt, 256)
        h2 = jnp.dot(h1, hw2[...], preferred_element_type=jnp.float32) + ht2[...]   # (Bt, 128)
        # drop1(p=0.2) is identity at inference time.
        res = jnp.dot(h2, w345[...], preferred_element_type=jnp.float32) + b345[...]  # (Bt,12)
        for i in range(Bt):
            out_ref[i] = res[i:i + 1, :]


# ----------------------------------------------------------------------------
# Tile choice: bounded VMEM, decent MXU M, >=2 parallel grid steps when B allows.
# ----------------------------------------------------------------------------
def _point_tile(n, max_tile=1024):
    for t in range(min(n, max_tile), 0, -1):
        if n % t == 0 and t % 8 == 0:
            return t
    return n


def _batch_tile(b, nt, max_rows=2048):
    best = 1
    for bt in range(1, b + 1):
        if b % bt:
            continue
        if b >= 2 and b // bt < 2:      # keep >=2 parallel steps (v7x has 2 TensorCores)
            continue
        if bt * nt > max_rows:          # cap per-step activation VMEM
            continue
        best = max(best, bt)
    return best


# ----------------------------------------------------------------------------
# Full forward = Point_center_res_cate.forward (eval mode)
# ----------------------------------------------------------------------------
@jax.jit
def forward(x_b3n, obj, F):
    B, _, N = x_b3n.shape
    x_bnc = jnp.transpose(x_b3n, (0, 2, 1))                 # (B, 3, N) -> (B, N, 3)
    obj = obj.reshape(B).astype(jnp.int32)

    Nt = _point_tile(N)
    Bt = _batch_tile(B, Nt)
    grid = (B // Bt, N // Nt)

    weight_order = ('W1', 'T1', 'W2', 'T2', 'W3', 'T3',
                    'HW1a', 'HW1b', 'HT1', 'HW2', 'HT2', 'W345', 'B345')
    weights = [F[name] for name in weight_order]

    in_specs = [pl.BlockSpec((Bt, Nt, 3), lambda b, k, o: (b, k, 0))]
    in_specs += [pl.BlockSpec(w.shape, lambda b, k, o: (0, 0)) for w in weights]

    out = pl.pallas_call(
        _fused_kernel,
        grid_spec=pltpu.PrefetchScalarGridSpec(
            num_scalar_prefetch=1,
            grid=grid,
            in_specs=in_specs,
            out_specs=pl.BlockSpec((Bt, 1, 12), lambda b, k, o: (b, 0, 0)),
            scratch_shapes=[pltpu.VMEM((Bt, 512), jnp.float32)],
        ),
        out_shape=jax.ShapeDtypeStruct((B, 1, 12), jnp.float32),
        compiler_params=pltpu.CompilerParams(
            dimension_semantics=("parallel", "arbitrary")),
    )(obj, x_bnc, *weights)

    out = out[:, 0, :]                                       # (B, 12)
    xt, xs = out[:, 0:3], out[:, 3:6]
    mu, log_var = out[:, 6:9], out[:, 9:12]
    return xt, xs, mu, log_var


# ----------------------------------------------------------------------------
# Deterministic synthetic parameters (shapes follow the module's __init__).
# ----------------------------------------------------------------------------
def _conv(key, c_in, c_out, scale=0.1):
    kw, kb = jax.random.split(key)
    w = scale * jax.random.normal(kw, (c_in, c_out), jnp.float32)
    b = scale * jax.random.normal(kb, (1, c_out), jnp.float32)
    return w, b


def _bn(key, c):
    k1, k2, k3, k4 = jax.random.split(key, 4)
    gamma = 1.0 + 0.1 * jax.random.normal(k1, (1, c), jnp.float32)
    beta = 0.1 * jax.random.normal(k2, (1, c), jnp.float32)
    mean = 0.1 * jax.random.normal(k3, (1, c), jnp.float32)
    var = 1.0 + 0.1 * jax.random.uniform(k4, (1, c), jnp.float32)
    scale = gamma / jnp.sqrt(var + EPS)
    shift = beta - mean * scale
    return scale, shift


def init_params(key):
    ks = jax.random.split(key, 16)
    P = {}
    # Point_center: conv1/2/3 (+ bn1/2/3).  conv4 is unused in its forward.
    P['f_w1'], P['f_b1'] = _conv(ks[0], 3, 128)
    P['f_s1'], P['f_t1'] = _bn(ks[1], 128)
    P['f_w2'], P['f_b2'] = _conv(ks[2], 128, 256)
    P['f_s2'], P['f_t2'] = _bn(ks[3], 256)
    P['f_w3'], P['f_b3'] = _conv(ks[4], 256, 512)
    P['f_s3'], P['f_t3'] = _bn(ks[5], 512)
    # Head: conv1(528->256)+bn1, conv2(256->128)+bn2, conv3(128->6), conv4(128->3), conv5(128->3)
    P['h_w1'], P['h_b1'] = _conv(ks[6], 512 + 16, 256)
    P['h_s1'], P['h_t1'] = _bn(ks[7], 256)
    P['h_w2'], P['h_b2'] = _conv(ks[8], 256, 128)
    P['h_s2'], P['h_t2'] = _bn(ks[9], 128)
    P['h_w3'], P['h_b3'] = _conv(ks[10], 128, 6)
    P['h_w4'], P['h_b4'] = _conv(ks[11], 128, 3)
    P['h_w5'], P['h_b5'] = _conv(ks[12], 128, 3)
    return P


def fold_params(P):
    """Fold conv bias + eval-mode BN into per-layer weight/shift; fuse head output convs."""
    F = {}
    F['W1'] = P['f_w1'] * P['f_s1']
    F['T1'] = P['f_b1'] * P['f_s1'] + P['f_t1']
    F['W2'] = P['f_w2'] * P['f_s2']
    F['T2'] = P['f_b2'] * P['f_s2'] + P['f_t2']
    F['W3'] = P['f_w3'] * P['f_s3']
    F['T3'] = P['f_b3'] * P['f_s3'] + P['f_t3']
    hw1 = P['h_w1'] * P['h_s1']                                     # (528, 256)
    F['HW1a'] = hw1[:512]                                           # point-feature part
    F['HW1b'] = hw1[512:]                                           # one-hot part (16, 256)
    F['HT1'] = P['h_b1'] * P['h_s1'] + P['h_t1']
    F['HW2'] = P['h_w2'] * P['h_s2']
    F['HT2'] = P['h_b2'] * P['h_s2'] + P['h_t2']
    F['W345'] = jnp.concatenate([P['h_w3'], P['h_w4'], P['h_w5']], axis=1)   # (128, 12)
    F['B345'] = jnp.concatenate([P['h_b3'], P['h_b4'], P['h_b5']], axis=1)   # (1, 12)
    return F


# ----------------------------------------------------------------------------
# Pure-JAX reference (unfused math, raw params) for a correctness check.
# ----------------------------------------------------------------------------
def reference(x_b3n, obj, P):
    x = jnp.transpose(x_b3n, (0, 2, 1))
    h = jnp.maximum((x @ P['f_w1'] + P['f_b1']) * P['f_s1'] + P['f_t1'], 0.0)
    h = jnp.maximum((h @ P['f_w2'] + P['f_b2']) * P['f_s2'] + P['f_t2'], 0.0)
    h = (h @ P['f_w3'] + P['f_b3']) * P['f_s3'] + P['f_t3']
    feat = jnp.max(h, axis=1)
    g = jnp.concatenate([feat, jax.nn.one_hot(obj, 16, dtype=jnp.float32)], axis=1)
    h = jnp.maximum((g @ P['h_w1'] + P['h_b1']) * P['h_s1'] + P['h_t1'], 0.0)
    h = (h @ P['h_w2'] + P['h_b2']) * P['h_s2'] + P['h_t2']
    x6 = h @ P['h_w3'] + P['h_b3']
    mu = h @ P['h_w4'] + P['h_b4']
    lv = h @ P['h_w5'] + P['h_b5']
    return x6[:, 0:3], x6[:, 3:6], mu, lv


if __name__ == "__main__":
    key = jax.random.PRNGKey(0)
    kx, ko, kp = jax.random.split(key, 3)

    B, N = 2, 64                                    # x in PyTorch Conv1d layout (B, 3, N)
    x = jax.random.normal(kx, (B, 3, N), jnp.float32)
    obj = jax.random.randint(ko, (B,), 0, 16, dtype=jnp.int32)
    P = init_params(kp)
    F = fold_params(P)

    xt, xs, mu, log_var = forward(x, obj, F)
    jax.block_until_ready((xt, xs, mu, log_var))

    # correctness check against pure-JAX reference
    rt, rs, rmu, rlv = reference(x, obj, P)
    for got, want in ((xt, rt), (xs, rs), (mu, rmu), (log_var, rlv)):
        assert got.shape == want.shape
        assert jnp.allclose(got, want, atol=1e-3, rtol=1e-3), (got, want)

    print("KERNEL_OK")
</pallas_src>

<mosaic_0001>
module attributes {stable_mosaic.version = 11 : i64} {
  func.func @_fused_kernel(%arg0: i32, %arg1: i32, %arg2: memref<2xi32, #tpu.memory_space<smem>>, %arg3: memref<1x64x3xf32, #tpu.memory_space<vmem>>, %arg4: memref<3x128xf32, #tpu.memory_space<vmem>>, %arg5: memref<1x128xf32, #tpu.memory_space<vmem>>, %arg6: memref<128x256xf32, #tpu.memory_space<vmem>>, %arg7: memref<1x256xf32, #tpu.memory_space<vmem>>, %arg8: memref<256x512xf32, #tpu.memory_space<vmem>>, %arg9: memref<1x512xf32, #tpu.memory_space<vmem>>, %arg10: memref<512x256xf32, #tpu.memory_space<vmem>>, %arg11: memref<16x256xf32, #tpu.memory_space<vmem>>, %arg12: memref<1x256xf32, #tpu.memory_space<vmem>>, %arg13: memref<256x128xf32, #tpu.memory_space<vmem>>, %arg14: memref<1x128xf32, #tpu.memory_space<vmem>>, %arg15: memref<128x12xf32, #tpu.memory_space<vmem>>, %arg16: memref<1x12xf32, #tpu.memory_space<vmem>>, %arg17: memref<1x1x12xf32, #tpu.memory_space<vmem>>, %arg18: memref<1x512xf32, #tpu.memory_space<vmem>>) attributes {dimension_semantics = [#tpu.dimension_semantics<parallel>, #tpu.dimension_semantics<arbitrary>], iteration_bounds = array<i64: 2, 1>, scalar_prefetch = 1 : i64, scratch_operands = 1 : i64, tpu.core_type = #tpu.core_type<tc>, window_params = [{transform_indices = @transform_0, window_bounds = array<i64: 1, 64, 3>}, {pipeline_mode = #tpu.pipeline_mode<synchronous>, transform_indices = @transform_1, window_bounds = array<i64: 3, 128>}, {pipeline_mode = #tpu.pipeline_mode<synchronous>, transform_indices = @transform_2, window_bounds = array<i64: 1, 128>}, {pipeline_mode = #tpu.pipeline_mode<synchronous>, transform_indices = @transform_3, window_bounds = array<i64: 128, 256>}, {pipeline_mode = #tpu.pipeline_mode<synchronous>, transform_indices = @transform_4, window_bounds = array<i64: 1, 256>}, {pipeline_mode = #tpu.pipeline_mode<synchronous>, transform_indices = @transform_5, window_bounds = array<i64: 256, 512>}, {pipeline_mode = #tpu.pipeline_mode<synchronous>, transform_indices = @transform_6, window_bounds = array<i64: 1, 512>}, {pipeline_mode = #tpu.pipeline_mode<synchronous>, transform_indices = @transform_7, window_bounds = array<i64: 512, 256>}, {pipeline_mode = #tpu.pipeline_mode<synchronous>, transform_indices = @transform_8, window_bounds = array<i64: 16, 256>}, {pipeline_mode = #tpu.pipeline_mode<synchronous>, transform_indices = @transform_9, window_bounds = array<i64: 1, 256>}, {pipeline_mode = #tpu.pipeline_mode<synchronous>, transform_indices = @transform_10, window_bounds = array<i64: 256, 128>}, {pipeline_mode = #tpu.pipeline_mode<synchronous>, transform_indices = @transform_11, window_bounds = array<i64: 1, 128>}, {pipeline_mode = #tpu.pipeline_mode<synchronous>, transform_indices = @transform_12, window_bounds = array<i64: 128, 12>}, {pipeline_mode = #tpu.pipeline_mode<synchronous>, transform_indices = @transform_13, window_bounds = array<i64: 1, 12>}, {transform_indices = @transform_14, window_bounds = array<i64: 1, 1, 12>}]} {
    %c0_i32 = arith.constant 0 : i32
    %0 = arith.cmpi eq, %arg1, %c0_i32 : i32
    %1 = arith.extui %0 : i1 to i32
    %c0_i32_0 = arith.constant 0 : i32
    %2 = arith.cmpi ne, %1, %c0_i32_0 : i32
    scf.if %2 {
      %cst_25 = arith.constant 0xFF800000 : f32
      %48 = vector.broadcast %cst_25 : f32 to vector<1x512xf32>
      %c0_26 = arith.constant 0 : index
      %c0_27 = arith.constant 0 : index
      %49 = vector.load %arg18[%c0_26, %c0_27] : memref<1x512xf32, #tpu.memory_space<vmem>>, vector<1x512xf32>
      tpu.vector_store %arg18[%c0_26, %c0_27], %48 {strides = array<i32>} : memref<1x512xf32, #tpu.memory_space<vmem>>, vector<1x512xf32>,
    } else {
    }
    %c0 = arith.constant 0 : index
    %c0_1 = arith.constant 0 : index
    %c0_2 = arith.constant 0 : index
    %3 = vector.load %arg3[%c0, %c0_1, %c0_2] : memref<1x64x3xf32, #tpu.memory_space<vmem>>, vector<1x64x3xf32>
    %4 = vector.shape_cast %3 : vector<1x64x3xf32> to vector<64x3xf32>
    %c0_3 = arith.constant 0 : index
    %c0_4 = arith.constant 0 : index
    %5 = vector.load %arg4[%c0_3, %c0_4] : memref<3x128xf32, #tpu.memory_space<vmem>>, vector<3x128xf32>
    %6 = vector.extract_strided_slice %4 {offsets = [0, 0], sizes = [64, 1], strides = [1, 1]} : vector<64x3xf32> to vector<64x1xf32>
    %7 = vector.extract_strided_slice %5 {offsets = [0, 0], sizes = [1, 128], strides = [1, 1]} : vector<3x128xf32> to vector<1x128xf32>
    %8 = vector.broadcast %6 : vector<64x1xf32> to vector<64x128xf32>
    %9 = vector.broadcast %7 : vector<1x128xf32> to vector<64x128xf32>
    %10 = arith.mulf %8, %9 : vector<64x128xf32>
    %11 = vector.extract_strided_slice %4 {offsets = [0, 1], sizes = [64, 1], strides = [1, 1]} : vector<64x3xf32> to vector<64x1xf32>
    %12 = vector.extract_strided_slice %5 {offsets = [1, 0], sizes = [1, 128], strides = [1, 1]} : vector<3x128xf32> to vector<1x128xf32>
    %13 = vector.broadcast %11 : vector<64x1xf32> to vector<64x128xf32>
    %14 = vector.broadcast %12 : vector<1x128xf32> to vector<64x128xf32>
    %15 = arith.mulf %13, %14 : vector<64x128xf32>
    %16 = arith.addf %10, %15 : vector<64x128xf32>
    %17 = vector.extract_strided_slice %4 {offsets = [0, 2], sizes = [64, 1], strides = [1, 1]} : vector<64x3xf32> to vector<64x1xf32>
    %18 = vector.extract_strided_slice %5 {offsets = [2, 0], sizes = [1, 128], strides = [1, 1]} : vector<3x128xf32> to vector<1x128xf32>
    %19 = vector.broadcast %17 : vector<64x1xf32> to vector<64x128xf32>
    %20 = vector.broadcast %18 : vector<1x128xf32> to vector<64x128xf32>
    %21 = arith.mulf %19, %20 : vector<64x128xf32>
    %22 = arith.addf %16, %21 : vector<64x128xf32>
    %c0_5 = arith.constant 0 : index
    %c0_6 = arith.constant 0 : index
    %23 = vector.load %arg5[%c0_5, %c0_6] : memref<1x128xf32, #tpu.memory_space<vmem>>, vector<1x128xf32>
    %24 = vector.broadcast %23 : vector<1x128xf32> to vector<64x128xf32>
    %25 = arith.addf %22, %24 : vector<64x128xf32>
    %cst = arith.constant 0.000000e+00 : f32
    %26 = vector.broadcast %cst : f32 to vector<64x128xf32>
    %27 = arith.maximumf %25, %26 : vector<64x128xf32>
    %c0_7 = arith.constant 0 : index
    %c0_8 = arith.constant 0 : index
    %28 = vector.load %arg6[%c0_7, %c0_8] : memref<128x256xf32, #tpu.memory_space<vmem>>, vector<128x256xf32>
    %cst_9 = arith.constant dense<0.000000e+00> : vector<64x256xf32>
    %29 = tpu.matmul %27, %28, %cst_9 {dimension_numbers = #tpu.dot_dimension_numbers<[1], [0], [0], [1], [0, 0, 1, 1], [], []>} : vector<64x128xf32>, vector<128x256xf32>, vector<64x256xf32> -> vector<64x256xf32>
    %c0_10 = arith.constant 0 : index
    %c0_11 = arith.constant 0 : index
    %30 = vector.load %arg7[%c0_10, %c0_11] : memref<1x256xf32, #tpu.memory_space<vmem>>, vector<1x256xf32>
    %31 = vector.broadcast %30 : vector<1x256xf32> to vector<64x256xf32>
    %32 = arith.addf %29, %31 : vector<64x256xf32>
    %cst_12 = arith.constant 0.000000e+00 : f32
    %33 = vector.broadcast %cst_12 : f32 to vector<64x256xf32>
    %34 = arith.maximumf %32, %33 : vector<64x256xf32>
    %c0_13 = arith.constant 0 : index
    %c0_14 = arith.constant 0 : index
    %35 = vector.load %arg8[%c0_13, %c0_14] : memref<256x512xf32, #tpu.memory_space<vmem>>, vector<256x512xf32>
    %cst_15 = arith.constant dense<0.000000e+00> : vector<64x512xf32>
    %36 = tpu.matmul %34, %35, %cst_15 {dimension_numbers = #tpu.dot_dimension_numbers<[1], [0], [0], [1], [0, 0, 1, 1], [], []>} : vector<64x256xf32>, vector<256x512xf32>, vector<64x512xf32> -> vector<64x512xf32>
    %c0_16 = arith.constant 0 : index
    %c0_17 = arith.constant 0 : index
    %37 = vector.load %arg9[%c0_16, %c0_17] : memref<1x512xf32, #tpu.memory_space<vmem>>, vector<1x512xf32>
    %38 = vector.broadcast %37 : vector<1x512xf32> to vector<64x512xf32>
    %39 = arith.addf %36, %38 : vector<64x512xf32>
    %40 = vector.shape_cast %39 : vector<64x512xf32> to vector<1x64x512xf32>
    %cst_18 = arith.constant dense<0xFF800000> : vector<1x512xf32>
    %41 = vector.multi_reduction <maximumf>, %40, %cst_18 [1] : vector<1x64x512xf32> to vector<1x512xf32>
    %c0_19 = arith.constant 0 : index
    %c0_20 = arith.constant 0 : index
    %42 = vector.load %arg18[%c0_19, %c0_20] : memref<1x512xf32, #tpu.memory_space<vmem>>, vector<1x512xf32>
    %43 = arith.maximumf %42, %41 : vector<1x512xf32>
    %c0_21 = arith.constant 0 : index
    %c0_22 = arith.constant 0 : index
    %44 = vector.load %arg18[%c0_21, %c0_22] : memref<1x512xf32, #tpu.memory_space<vmem>>, vector<1x512xf32>
    tpu.vector_store %arg18[%c0_21, %c0_22], %43 {strides = array<i32>} : memref<1x512xf32, #tpu.memory_space<vmem>>, vector<1x512xf32>,
    %c0_i32_23 = arith.constant 0 : i32
    %45 = arith.cmpi eq, %arg1, %c0_i32_23 : i32
    %46 = arith.extui %45 : i1 to i32
    %c0_i32_24 = arith.constant 0 : i32
    %47 = arith.cmpi ne, %46, %c0_i32_24 : i32
    scf.if %47 {
      %c0_25 = arith.constant 0 : index
      %c0_26 = arith.constant 0 : index
      %48 = vector.load %arg18[%c0_25, %c0_26] : memref<1x512xf32, #tpu.memory_space<vmem>>, vector<1x512xf32>
      %c0_27 = arith.constant 0 : index
      %c0_28 = arith.constant 0 : index
      %49 = vector.load %arg10[%c0_27, %c0_28] : memref<512x256xf32, #tpu.memory_space<vmem>>, vector<512x256xf32>
      %cst_29 = arith.constant dense<0.000000e+00> : vector<1x256xf32>
      %50 = tpu.matmul %48, %49, %cst_29 {dimension_numbers = #tpu.dot_dimension_numbers<[1], [0], [0], [1], [0, 0, 1, 1], [], []>} : vector<1x512xf32>, vector<512x256xf32>, vector<1x256xf32> -> vector<1x256xf32>
      %c0_30 = arith.constant 0 : index
      %c0_31 = arith.constant 0 : index
      %51 = vector.load %arg12[%c0_30, %c0_31] : memref<1x256xf32, #tpu.memory_space<vmem>>, vector<1x256xf32>
      %52 = arith.addf %50, %51 : vector<1x256xf32>
      %c1_i32 = arith.constant 1 : i32
      %53 = arith.muli %arg0, %c1_i32 : i32
      %c0_i32_32 = arith.constant 0 : i32
      %54 = arith.addi %53, %c0_i32_32 : i32
      %55 = arith.index_cast %54 : i32 to index
      %56 = memref.load %arg2[%55] : memref<2xi32, #tpu.memory_space<smem>>
      %57 = arith.index_cast %56 : i32 to index
      %c0_33 = arith.constant 0 : index
      %58 = vector.load %arg11[%57, %c0_33] : memref<16x256xf32, #tpu.memory_space<vmem>>, vector<1x256xf32>
      %59 = arith.addf %52, %58 : vector<1x256xf32>
      %cst_34 = arith.constant 0.000000e+00 : f32
      %60 = vector.broadcast %cst_34 : f32 to vector<1x256xf32>
      %61 = arith.maximumf %59, %60 : vector<1x256xf32>
      %c0_35 = arith.constant 0 : index
      %c0_36 = arith.constant 0 : index
      %62 = vector.load %arg13[%c0_35, %c0_36] : memref<256x128xf32, #tpu.memory_space<vmem>>, vector<256x128xf32>
      %cst_37 = arith.constant dense<0.000000e+00> : vector<1x128xf32>
      %63 = tpu.matmul %61, %62, %cst_37 {dimension_numbers = #tpu.dot_dimension_numbers<[1], [0], [0], [1], [0, 0, 1, 1], [], []>} : vector<1x256xf32>, vector<256x128xf32>, vector<1x128xf32> -> vector<1x128xf32>
      %c0_38 = arith.constant 0 : index
      %c0_39 = arith.constant 0 : index
      %64 = vector.load %arg14[%c0_38, %c0_39] : memref<1x128xf32, #tpu.memory_space<vmem>>, vector<1x128xf32>
      %65 = arith.addf %63, %64 : vector<1x128xf32>
      %c0_40 = arith.constant 0 : index
      %c0_41 = arith.constant 0 : index
      %66 = vector.load %arg15[%c0_40, %c0_41] : memref<128x12xf32, #tpu.memory_space<vmem>>, vector<128x12xf32>
      %cst_42 = arith.constant dense<0.000000e+00> : vector<1x12xf32>
      %67 = tpu.matmul %65, %66, %cst_42 {dimension_numbers = #tpu.dot_dimension_numbers<[1], [0], [0], [1], [0, 0, 1, 1], [], []>} : vector<1x128xf32>, vector<128x12xf32>, vector<1x12xf32> -> vector<1x12xf32>
      %c0_43 = arith.constant 0 : index
      %c0_44 = arith.constant 0 : index
      %68 = vector.load %arg16[%c0_43, %c0_44] : memref<1x12xf32, #tpu.memory_space<vmem>>, vector<1x12xf32>
      %69 = arith.addf %67, %68 : vector<1x12xf32>
      %c0_45 = arith.constant 0 : index
      %c0_46 = arith.constant 0 : index
      %c0_47 = arith.constant 0 : index
      %70 = vector.load %arg17[%c0_45, %c0_46, %c0_47] : memref<1x1x12xf32, #tpu.memory_space<vmem>>, vector<1x1x12xf32>
      %71 = vector.shape_cast %70 : vector<1x1x12xf32> to vector<1x12xf32>
      %72 = vector.shape_cast %69 : vector<1x12xf32> to vector<1x1x12xf32>
      tpu.vector_store %arg17[%c0_45, %c0_46, %c0_47], %72 {strides = array<i32>} : memref<1x1x12xf32, #tpu.memory_space<vmem>>, vector<1x1x12xf32>,
    } else {
    }
    return
  }
  func.func @transform_0(%arg0: i32, %arg1: i32, %arg2: memref<2xi32, #tpu.memory_space<smem>>) -> (i32, i32, i32) {
    %c0_i32 = arith.constant 0 : i32
    %c0_i32_0 = arith.constant 0 : i32
    return %arg0, %arg1, %c0_i32 : i32, i32, i32
  }
  func.func @transform_1(%arg0: i32, %arg1: i32, %arg2: memref<2xi32, #tpu.memory_space<smem>>) -> (i32, i32) {
    %c0_i32 = arith.constant 0 : i32
    %c0_i32_0 = arith.constant 0 : i32
    %c0_i32_1 = arith.constant 0 : i32
    return %c0_i32, %c0_i32_0 : i32, i32
  }
  func.func @transform_2(%arg0: i32, %arg1: i32, %arg2: memref<2xi32, #tpu.memory_space<smem>>) -> (i32, i32) {
    %c0_i32 = arith.constant 0 : i32
    %c0_i32_0 = arith.constant 0 : i32
    %c0_i32_1 = arith.constant 0 : i32
    return %c0_i32, %c0_i32_0 : i32, i32
  }
  func.func @transform_3(%arg0: i32, %arg1: i32, %arg2: memref<2xi32, #tpu.memory_space<smem>>) -> (i32, i32) {
    %c0_i32 = arith.constant 0 : i32
    %c0_i32_0 = arith.constant 0 : i32
    %c0_i32_1 = arith.constant 0 : i32
    return %c0_i32, %c0_i32_0 : i32, i32
  }
  func.func @transform_4(%arg0: i32, %arg1: i32, %arg2: memref<2xi32, #tpu.memory_space<smem>>) -> (i32, i32) {
    %c0_i32 = arith.constant 0 : i32
    %c0_i32_0 = arith.constant 0 : i32
    %c0_i32_1 = arith.constant 0 : i32
    return %c0_i32, %c0_i32_0 : i32, i32
  }
  func.func @transform_5(%arg0: i32, %arg1: i32, %arg2: memref<2xi32, #tpu.memory_space<smem>>) -> (i32, i32) {
    %c0_i32 = arith.constant 0 : i32
    %c0_i32_0 = arith.constant 0 : i32
    %c0_i32_1 = arith.constant 0 : i32
    return %c0_i32, %c0_i32_0 : i32, i32
  }
  func.func @transform_6(%arg0: i32, %arg1: i32, %arg2: memref<2xi32, #tpu.memory_space<smem>>) -> (i32, i32) {
    %c0_i32 = arith.constant 0 : i32
    %c0_i32_0 = arith.constant 0 : i32
    %c0_i32_1 = arith.constant 0 : i32
    return %c0_i32, %c0_i32_0 : i32, i32
  }
  func.func @transform_7(%arg0: i32, %arg1: i32, %arg2: memref<2xi32, #tpu.memory_space<smem>>) -> (i32, i32) {
    %c0_i32 = arith.constant 0 : i32
    %c0_i32_0 = arith.constant 0 : i32
    %c0_i32_1 = arith.constant 0 : i32
    return %c0_i32, %c0_i32_0 : i32, i32
  }
  func.func @transform_8(%arg0: i32, %arg1: i32, %arg2: memref<2xi32, #tpu.memory_space<smem>>) -> (i32, i32) {
    %c0_i32 = arith.constant 0 : i32
    %c0_i32_0 = arith.constant 0 : i32
    %c0_i32_1 = arith.constant 0 : i32
    return %c0_i32, %c0_i32_0 : i32, i32
  }
  func.func @transform_9(%arg0: i32, %arg1: i32, %arg2: memref<2xi32, #tpu.memory_space<smem>>) -> (i32, i32) {
    %c0_i32 = arith.constant 0 : i32
    %c0_i32_0 = arith.constant 0 : i32
    %c0_i32_1 = arith.constant 0 : i32
    return %c0_i32, %c0_i32_0 : i32, i32
  }
  func.func @transform_10(%arg0: i32, %arg1: i32, %arg2: memref<2xi32, #tpu.memory_space<smem>>) -> (i32, i32) {
    %c0_i32 = arith.constant 0 : i32
    %c0_i32_0 = arith.constant 0 : i32
    %c0_i32_1 = arith.constant 0 : i32
    return %c0_i32, %c0_i32_0 : i32, i32
  }
  func.func @transform_11(%arg0: i32, %arg1: i32, %arg2: memref<2xi32, #tpu.memory_space<smem>>) -> (i32, i32) {
    %c0_i32 = arith.constant 0 : i32
    %c0_i32_0 = arith.constant 0 : i32
    %c0_i32_1 = arith.constant 0 : i32
    return %c0_i32, %c0_i32_0 : i32, i32
  }
  func.func @transform_12(%arg0: i32, %arg1: i32, %arg2: memref<2xi32, #tpu.memory_space<smem>>) -> (i32, i32) {
    %c0_i32 = arith.constant 0 : i32
    %c0_i32_0 = arith.constant 0 : i32
    %c0_i32_1 = arith.constant 0 : i32
    return %c0_i32, %c0_i32_0 : i32, i32
  }
  func.func @transform_13(%arg0: i32, %arg1: i32, %arg2: memref<2xi32, #tpu.memory_space<smem>>) -> (i32, i32) {
    %c0_i32 = arith.constant 0 : i32
    %c0_i32_0 = arith.constant 0 : i32
    %c0_i32_1 = arith.constant 0 : i32
    return %c0_i32, %c0_i32_0 : i32, i32
  }
  func.func @transform_14(%arg0: i32, %arg1: i32, %arg2: memref<2xi32, #tpu.memory_space<smem>>) -> (i32, i32, i32) {
    %c0_i32 = arith.constant 0 : i32
    %c0_i32_0 = arith.constant 0 : i32
    %c0_i32_1 = arith.constant 0 : i32
    return %arg0, %c0_i32, %c0_i32_0 : i32, i32, i32
  }
}

</mosaic_0001>

<llo_original>
// kernel: forward.1
$region0: #{forward.1}
  #allocation0 [shape = 'u32[]', space=smem, size = 0x4, offset = 0x4, fixed_abs, tag = 'smem constant byte address 0x4 - core index']
  #allocation1 [shape = 'u32[72,128]{1,0:T(1,128)}', space=vmem, size = 0x9000, scoped, tag = 'internal scratch']
  #allocation2 [shape = 'f32[1,512]{1,0:T(1,128)}', space=vmem, size = 0x800, scoped, tag = 'scratch operand']
  #allocation3 [shape = 's32[1]{0}', space=sflag, size = 0x4, scoped, tag = 'scoped memory for forward.1']
  #allocation4 [shape = 'u8[512]{0}', space=smem, size = 0x200, scoped, tag = 'prefetched SMEM operand 0']
  %s0 = inlined_call_operand.hbm [shape: s32[2], index: 0, kind: input, shape index: {}]
  %s1 = inlined_call_operand.vmem [shape: f32[2,64,3], index: 1, kind: input, shape index: {}]
  %s2 = inlined_call_operand.vmem [shape: f32[3,128], index: 2, kind: input, shape index: {}]
  %s3 = inlined_call_operand.vmem [shape: f32[1,128], index: 3, kind: input, shape index: {}]
  %s4 = inlined_call_operand.vmem [shape: f32[128,256], index: 4, kind: input, shape index: {}]
  %s5 = inlined_call_operand.vmem [shape: f32[1,256], index: 5, kind: input, shape index: {}]
  %s6 = inlined_call_operand.hbm [shape: f32[256,512], index: 6, kind: input, shape index: {}]
  %s7 = inlined_call_operand.vmem [shape: f32[1,512], index: 7, kind: input, shape index: {}]
  %s8 = inlined_call_operand.hbm [shape: f32[512,256], index: 8, kind: input, shape index: {}]
  %s9 = inlined_call_operand.hbm [shape: f32[16,256], index: 9, kind: input, shape index: {}]
  %s10 = inlined_call_operand.hbm [shape: f32[1,256], index: 10, kind: input, shape index: {}]
  %s11 = inlined_call_operand.hbm [shape: f32[256,128], index: 11, kind: input, shape index: {}]
  %s12 = inlined_call_operand.hbm [shape: f32[1,128], index: 12, kind: input, shape index: {}]
  %s13 = inlined_call_operand.vmem [shape: f32[128,12], index: 13, kind: input, shape index: {}]
  %s14 = inlined_call_operand.hbm [shape: f32[1,12], index: 14, kind: input, shape index: {}]
  %s15 = inlined_call_operand.vmem [shape: f32[2,1,12], index: 15, kind: output, shape index: {}]
  %s16 = sld [smem:[#allocation0]]
  $region125: #{forward.1} parent=0
    _
  %s18 = ssub.s32 1, %s16
  %s19 = scalar_select 0, %s18, %s16
  %s21 = sshll.u32 %s0, 4
  %s22 = int_to_ptr.hbm [resolvable:$true] %s21
  %24 = dma.hbm_to_smem %s22, 16, [#allocation4], [#allocation3]
  %26 = dma.done [#allocation3], 16
  %27 = sfence
  $region1: #{forward.1} parent=0
    #allocation5 [shape = 'u8[524288]{0}', space=vmem, size = 0x80000, scoped, tag = 'input window, operand 6, single buffered']
    #allocation6 [shape = 's32[2]{0}', space=sflag, size = 0x8, scoped, tag = 'scoped memory for forward.1']
    #allocation7 [shape = 'u8[524288]{0}', space=vmem, size = 0x80000, scoped, tag = 'input window, operand 8, single buffered']
    #allocation8 [shape = 's32[1]{0}', space=sflag, size = 0x4, scoped, tag = 'scoped memory for forward.1']
    #allocation9 [shape = 'u8[16384]{0}', space=vmem, size = 0x4000, scoped, tag = 'input window, operand 9, single buffered']
    #allocation10 [shape = 'u8[1024]{0}', space=vmem, size = 0x400, scoped, tag = 'input window, operand 10, single buffered']
    #allocation11 [shape = 's32[1]{0}', space=sflag, size = 0x4, scoped, tag = 'scoped memory for forward.1']
    #allocation12 [shape = 'u8[131072]{0}', space=vmem, size = 0x20000, scoped, tag = 'input window, operand 11, single buffered']
    #allocation13 [shape = 'u8[512]{0}', space=vmem, size = 0x400, scoped, tag = 'input window, operand 12, single buffered']
    #allocation14 [shape = 's32[1]{0}', space=sflag, size = 0x4, scoped, tag = 'scoped memory for forward.1']
    #allocation15 [shape = 'u8[512]{0}', space=vmem, size = 0x400, scoped, tag = 'input window, operand 14, single buffered']
    %28 = vsyncpa [#allocation6], 0
    %29 = vsyncpa [#allocation8], 0
    %30 = vsyncpa [#allocation11], 0
    %31 = vsyncpa [#allocation14], 0
    loop: start=0, step=1, limit=4
    $region2: #{forward.1} parent=1 // loop_pre_header
      _
    $region3: #{forward.1} parent=1 // loop_header
      %s33 = sphi 0, %s37
      %p34 = scmp.ge.s32.totalorder %s33, 4
      %s40 = sphi 0, %s52
      %s41 = sphi 0, %s48
      %s42 = sphi 0, %s40
      %s43 = sphi 0, %s41
      %s44 = sphi 0, %s42
      %s45 = sphi 0, %s43
      %s57 = sphi 0, %s59
      %s60 = sphi 0, %s57
      %s61 = sphi 0, %s60
      %s77 = sphi 0, %s61
      %s81 = sphi 0, %s81
      %s83 = sphi 0, %s81
      %s84 = sphi 0, %s83
      %s98 = sphi 0, %s84
      %s102 = sphi 0, %s102
      %s104 = sphi 0, %s102
      %s105 = sphi 0, %s104
      %s119 = sphi 0, %s105
      %s123 = sphi 0, %s123
      %s125 = sphi 0, %s123
      %s126 = sphi 0, %s125
      %s140 = sphi 0, %s126
      %s144 = sphi 0, %s144
      %s146 = sphi 0, %s144
      %s147 = sphi 0, %s146
      %s161 = sphi 0, %s147
      %s165 = sphi 0, %s165
      %s167 = sphi 0, %s165
      %s168 = sphi 0, %s167
      %s182 = sphi 0, %s168
      %s186 = sphi 0, %s186
      %s188 = sphi 0, %s186
      %s189 = sphi 0, %s188
      %s203 = sphi 0, %s189
      %s207 = sphi 0, %s207
      %s209 = sphi 0, %s207
      %s210 = sphi 0, %s209
      %s224 = sphi 0, %s210
      %s228 = sphi 0, %s228
      %s230 = sphi 0, %s228
      %s231 = sphi 0, %s230
      %s245 = sphi 0, %s231
      %s249 = sphi 0, %s249
      %s251 = sphi 0, %s249
      %s252 = sphi 0, %s251
      %s266 = sphi 0, %s252
      %s270 = sphi 0, %s270
      %s272 = sphi 0, %s270
      %s273 = sphi 0, %s272
      %s287 = sphi 0, %s273
      %s291 = sphi 0, %s291
      %s293 = sphi 0, %s291
      %s294 = sphi 0, %s293
      %s308 = sphi 0, %s294
      %s312 = sphi 0, %s312
      %s314 = sphi 0, %s312
      %s315 = sphi 0, %s314
      %s329 = sphi 0, %s315
      %s333 = sphi 0, %s333
      %s335 = sphi 0, %s333
      %s336 = sphi 0, %s335
      %s350 = sphi 0, %s336
      %s356 = sphi 0, %s358
      %s359 = sphi 0, %s356
      %s360 = sphi 0, %s359
      %s376 = sphi 0, %s360
    $region4: #{forward.1} parent=1 // loop_header_branch
      %36 = sbr.rel (%p34) target = $region8
    $region5: #{forward.1} parent=1 // loop_body
      %s38 = ssub.s32 %s33, 1
      %s39 = ssub.s32 %s33, 2
      %s46 = sadd.s32 1, %s41
      %p47 = scmp.ge.s32.totalorder %s46, 1
      %s48 = scalar_select %p47, 0, %s46
      %s49 = sadd.s32 1, %s40
      %s50 = scalar_select %p47, %s49, %s40
      %p51 = scmp.ge.s32.totalorder %s50, 2
      %s52 = scalar_select %p51, 0, %s50
      %s53 = ssub.s32 %s40, %s52
      %s54 = ssub.s32 %s41, %s48
      %s55 = sor.u32 %s53, %s54
      %p56 = scmp.eq.s32.totalorder %s55, 0
      %s58 = sadd.s32 %s57, 1
      %s59 = scalar_select %p56, %s57, %s58
      %p62 = pneg %p56
      %p63 = scmp.eq.s32.totalorder %s33, 1
      %p64 = por %p62, %p63
      %p65 = scmp.ne.s32.totalorder %s57, %s60
      %p66 = scmp.eq.s32.totalorder %s33, 0
      %p67 = por %p65, %p66
      %p68 = scmp.ne.s32.totalorder %s57, %s60
      %p69 = scmp.eq.s32.totalorder %s38, 1
      %p70 = por %p68, %p69
      %p71 = scmp.ne.s32.totalorder %s60, %s61
      %p72 = scmp.eq.s32.totalorder %s38, 0
      %p73 = por %p71, %p72
      %p74 = scmp.ne.s32.totalorder %s60, %s61
      %p75 = scmp.eq.s32.totalorder %s39, 1
      %p76 = por %p74, %p75
      %p78 = scmp.ne.s32.totalorder %s61, %s77
      %p79 = scmp.eq.s32.totalorder %s39, 0
      %p80 = por %p78, %p79
      %s82 = sadd.s32 %s81, 1
      %p85 = scmp.eq.s32.totalorder %s33, 1
      %p86 = scmp.ne.s32.totalorder %s81, %s83
      %p87 = scmp.eq.s32.totalorder %s33, 0
      %p88 = por %p86, %p87
      %p89 = scmp.ne.s32.totalorder %s81, %s83
      %p90 = scmp.eq.s32.totalorder %s38, 1
      %p91 = por %p89, %p90
      %p92 = scmp.ne.s32.totalorder %s83, %s84
      %p93 = scmp.eq.s32.totalorder %s38, 0
      %p94 = por %p92, %p93
      %p95 = scmp.ne.s32.totalorder %s83, %s84
      %p96 = scmp.eq.s32.totalorder %s39, 1
      %p97 = por %p95, %p96
      %p99 = scmp.ne.s32.totalorder %s84, %s98
      %p100 = scmp.eq.s32.totalorder %s39, 0
      %p101 = por %p99, %p100
      %s103 = sadd.s32 %s102, 1
      %p106 = scmp.eq.s32.totalorder %s33, 1
      %p107 = scmp.ne.s32.totalorder %s102, %s104
      %p108 = scmp.eq.s32.totalorder %s33, 0
      %p109 = por %p107, %p108
      %p110 = scmp.ne.s32.totalorder %s102, %s104
      %p111 = scmp.eq.s32.totalorder %s38, 1
      %p112 = por %p110, %p111
      %p113 = scmp.ne.s32.totalorder %s104, %s105
      %p114 = scmp.eq.s32.totalorder %s38, 0
      %p115 = por %p113, %p114
      %p116 = scmp.ne.s32.totalorder %s104, %s105
      %p117 = scmp.eq.s32.totalorder %s39, 1
      %p118 = por %p116, %p117
      %p120 = scmp.ne.s32.totalorder %s105, %s119
      %p121 = scmp.eq.s32.totalorder %s39, 0
      %p122 = por %p120, %p121
      %s124 = sadd.s32 %s123, 1
      %p127 = scmp.eq.s32.totalorder %s33, 1
      %p128 = scmp.ne.s32.totalorder %s123, %s125
      %p129 = scmp.eq.s32.totalorder %s33, 0
      %p130 = por %p128, %p129
      %p131 = scmp.ne.s32.totalorder %s123, %s125
      %p132 = scmp.eq.s32.totalorder %s38, 1
      %p133 = por %p131, %p132
      %p134 = scmp.ne.s32.totalorder %s125, %s126
      %p135 = scmp.eq.s32.totalorder %s38, 0
      %p136 = por %p134, %p135
      %p137 = scmp.ne.s32.totalorder %s125, %s126
      %p138 = scmp.eq.s32.totalorder %s39, 1
      %p139 = por %p137, %p138
      %p141 = scmp.ne.s32.totalorder %s126, %s140
      %p142 = scmp.eq.s32.totalorder %s39, 0
      %p143 = por %p141, %p142
      %s145 = sadd.s32 %s144, 1
      %p148 = scmp.eq.s32.totalorder %s33, 1
      %p149 = scmp.ne.s32.totalorder %s144, %s146
      %p150 = scmp.eq.s32.totalorder %s33, 0
      %p151 = por %p149, %p150
      %p152 = scmp.ne.s32.totalorder %s144, %s146
      %p153 = scmp.eq.s32.totalorder %s38, 1
      %p154 = por %p152, %p153
      %p155 = scmp.ne.s32.totalorder %s146, %s147
      %p156 = scmp.eq.s32.totalorder %s38, 0
      %p157 = por %p155, %p156
      %p158 = scmp.ne.s32.totalorder %s146, %s147
      %p159 = scmp.eq.s32.totalorder %s39, 1
      %p160 = por %p158, %p159
      %p162 = scmp.ne.s32.totalorder %s147, %s161
      %p163 = scmp.eq.s32.totalorder %s39, 0
      %p164 = por %p162, %p163
      %s166 = sadd.s32 %s165, 1
      %p169 = scmp.eq.s32.totalorder %s33, 1
      %p170 = scmp.ne.s32.totalorder %s165, %s167
      %p171 = scmp.eq.s32.totalorder %s33, 0
      %p172 = por %p170, %p171
      %p173 = scmp.ne.s32.totalorder %s165, %s167
      %p174 = scmp.eq.s32.totalorder %s38, 1
      %p175 = por %p173, %p174
      %p176 = scmp.ne.s32.totalorder %s167, %s168
      %p177 = scmp.eq.s32.totalorder %s38, 0
      %p178 = por %p176, %p177
      %p179 = scmp.ne.s32.totalorder %s167, %s168
      %p180 = scmp.eq.s32.totalorder %s39, 1
      %p181 = por %p179, %p180
      %p183 = scmp.ne.s32.totalorder %s168, %s182
      %p184 = scmp.eq.s32.totalorder %s39, 0
      %p185 = por %p183, %p184
      %s187 = sadd.s32 %s186, 1
      %p190 = scmp.eq.s32.totalorder %s33, 1
      %p191 = scmp.ne.s32.totalorder %s186, %s188
      %p192 = scmp.eq.s32.totalorder %s33, 0
      %p193 = por %p191, %p192
      %p194 = scmp.ne.s32.totalorder %s186, %s188
      %p195 = scmp.eq.s32.totalorder %s38, 1
      %p196 = por %p194, %p195
      %p197 = scmp.ne.s32.totalorder %s188, %s189
      %p198 = scmp.eq.s32.totalorder %s38, 0
      %p199 = por %p197, %p198
      %p200 = scmp.ne.s32.totalorder %s188, %s189
      %p201 = scmp.eq.s32.totalorder %s39, 1
      %p202 = por %p200, %p201
      %p204 = scmp.ne.s32.totalorder %s189, %s203
      %p205 = scmp.eq.s32.totalorder %s39, 0
      %p206 = por %p204, %p205
      %s208 = sadd.s32 %s207, 1
      %p211 = scmp.eq.s32.totalorder %s33, 1
      %p212 = scmp.ne.s32.totalorder %s207, %s209
      %p213 = scmp.eq.s32.totalorder %s33, 0
      %p214 = por %p212, %p213
      %p215 = scmp.ne.s32.totalorder %s207, %s209
      %p216 = scmp.eq.s32.totalorder %s38, 1
      %p217 = por %p215, %p216
      %p218 = scmp.ne.s32.totalorder %s209, %s210
      %p219 = scmp.eq.s32.totalorder %s38, 0
      %p220 = por %p218, %p219
      %p221 = scmp.ne.s32.totalorder %s209, %s210
      %p222 = scmp.eq.s32.totalorder %s39, 1
      %p223 = por %p221, %p222
      %p225 = scmp.ne.s32.totalorder %s210, %s224
      %p226 = scmp.eq.s32.totalorder %s39, 0
      %p227 = por %p225, %p226
      %s229 = sadd.s32 %s228, 1
      %p232 = scmp.eq.s32.totalorder %s33, 1
      %p233 = scmp.ne.s32.totalorder %s228, %s230
      %p234 = scmp.eq.s32.totalorder %s33, 0
      %p235 = por %p233, %p234
      %p236 = scmp.ne.s32.totalorder %s228, %s230
      %p237 = scmp.eq.s32.totalorder %s38, 1
      %p238 = por %p236, %p237
      %p239 = scmp.ne.s32.totalorder %s230, %s231
      %p240 = scmp.eq.s32.totalorder %s38, 0
      %p241 = por %p239, %p240
      %p242 = scmp.ne.s32.totalorder %s230, %s231
      %p243 = scmp.eq.s32.totalorder %s39, 1
      %p244 = por %p242, %p243
      %p246 = scmp.ne.s32.totalorder %s231, %s245
      %p247 = scmp.eq.s32.totalorder %s39, 0
      %p248 = por %p246, %p247
      %s250 = sadd.s32 %s249, 1
      %p253 = scmp.eq.s32.totalorder %s33, 1
      %p254 = scmp.ne.s32.totalorder %s249, %s251
      %p255 = scmp.eq.s32.totalorder %s33, 0
      %p256 = por %p254, %p255
      %p257 = scmp.ne.s32.totalorder %s249, %s251
      %p258 = scmp.eq.s32.totalorder %s38, 1
      %p259 = por %p257, %p258
      %p260 = scmp.ne.s32.totalorder %s251, %s252
      %p261 = scmp.eq.s32.totalorder %s38, 0
      %p262 = por %p260, %p261
      %p263 = scmp.ne.s32.totalorder %s251, %s252
      %p264 = scmp.eq.s32.totalorder %s39, 1
      %p265 = por %p263, %p264
      %p267 = scmp.ne.s32.totalorder %s252, %s266
      %p268 = scmp.eq.s32.totalorder %s39, 0
      %p269 = por %p267, %p268
      %s271 = sadd.s32 %s270, 1
      %p274 = scmp.eq.s32.totalorder %s33, 1
      %p275 = scmp.ne.s32.totalorder %s270, %s272
      %p276 = scmp.eq.s32.totalorder %s33, 0
      %p277 = por %p275, %p276
      %p278 = scmp.ne.s32.totalorder %s270, %s272
      %p279 = scmp.eq.s32.totalorder %s38, 1
      %p280 = por %p278, %p279
      %p281 = scmp.ne.s32.totalorder %s272, %s273
      %p282 = scmp.eq.s32.totalorder %s38, 0
      %p283 = por %p281, %p282
      %p284 = scmp.ne.s32.totalorder %s272, %s273
      %p285 = scmp.eq.s32.totalorder %s39, 1
      %p286 = por %p284, %p285
      %p288 = scmp.ne.s32.totalorder %s273, %s287
      %p289 = scmp.eq.s32.totalorder %s39, 0
      %p290 = por %p288, %p289
      %s292 = sadd.s32 %s291, 1
      %p295 = scmp.eq.s32.totalorder %s33, 1
      %p296 = scmp.ne.s32.totalorder %s291, %s293
      %p297 = scmp.eq.s32.totalorder %s33, 0
      %p298 = por %p296, %p297
      %p299 = scmp.ne.s32.totalorder %s291, %s293
      %p300 = scmp.eq.s32.totalorder %s38, 1
      %p301 = por %p299, %p300
      %p302 = scmp.ne.s32.totalorder %s293, %s294
      %p303 = scmp.eq.s32.totalorder %s38, 0
      %p304 = por %p302, %p303
      %p305 = scmp.ne.s32.totalorder %s293, %s294
      %p306 = scmp.eq.s32.totalorder %s39, 1
      %p307 = por %p305, %p306
      %p309 = scmp.ne.s32.totalorder %s294, %s308
      %p310 = scmp.eq.s32.totalorder %s39, 0
      %p311 = por %p309, %p310
      %s313 = sadd.s32 %s312, 1
      %p316 = scmp.eq.s32.totalorder %s33, 1
      %p317 = scmp.ne.s32.totalorder %s312, %s314
      %p318 = scmp.eq.s32.totalorder %s33, 0
      %p319 = por %p317, %p318
      %p320 = scmp.ne.s32.totalorder %s312, %s314
      %p321 = scmp.eq.s32.totalorder %s38, 1
      %p322 = por %p320, %p321
      %p323 = scmp.ne.s32.totalorder %s314, %s315
      %p324 = scmp.eq.s32.totalorder %s38, 0
      %p325 = por %p323, %p324
      %p326 = scmp.ne.s32.totalorder %s314, %s315
      %p327 = scmp.eq.s32.totalorder %s39, 1
      %p328 = por %p326, %p327
      %p330 = scmp.ne.s32.totalorder %s315, %s329
      %p331 = scmp.eq.s32.totalorder %s39, 0
      %p332 = por %p330, %p331
      %s334 = sadd.s32 %s333, 1
      %p337 = scmp.eq.s32.totalorder %s33, 1
      %p338 = scmp.ne.s32.totalorder %s333, %s335
      %p339 = scmp.eq.s32.totalorder %s33, 0
      %p340 = por %p338, %p339
      %p341 = scmp.ne.s32.totalorder %s333, %s335
      %p342 = scmp.eq.s32.totalorder %s38, 1
      %p343 = por %p341, %p342
      %p344 = scmp.ne.s32.totalorder %s335, %s336
      %p345 = scmp.eq.s32.totalorder %s38, 0
      %p346 = por %p344, %p345
      %p347 = scmp.ne.s32.totalorder %s335, %s336
      %p348 = scmp.eq.s32.totalorder %s39, 1
      %p349 = por %p347, %p348
      %p351 = scmp.ne.s32.totalorder %s336, %s350
      %p352 = scmp.eq.s32.totalorder %s39, 0
      %p353 = por %p351, %p352
      %s354 = ssub.s32 %s40, %s52
      %p355 = scmp.eq.s32.totalorder %s354, 0
      %s357 = sadd.s32 %s356, 1
      %s358 = scalar_select %p355, %s356, %s357
      %p361 = pneg %p355
      %p362 = scmp.eq.s32.totalorder %s33, 1
      %p363 = por %p361, %p362
      %p364 = scmp.ne.s32.totalorder %s356, %s359
      %p365 = scmp.eq.s32.totalorder %s33, 0
      %p366 = por %p364, %p365
      %p367 = scmp.ne.s32.totalorder %s356, %s359
      %p368 = scmp.eq.s32.totalorder %s38, 1
      %p369 = por %p367, %p368
      %p370 = scmp.ne.s32.totalorder %s359, %s360
      %p371 = scmp.eq.s32.totalorder %s38, 0
      %p372 = por %p370, %p371
      %p373 = scmp.ne.s32.totalorder %s359, %s360
      %p374 = scmp.eq.s32.totalorder %s39, 1
      %p375 = por %p373, %p374
      %p377 = scmp.ne.s32.totalorder %s360, %s376
      %p378 = scmp.eq.s32.totalorder %s39, 0
      %p379 = por %p377, %p378
      %p380 = scmp.le.s32.totalorder 1, %s33
      %p381 = scmp.lt.s32.totalorder %s33, 3
      %p382 = pnand %p380, %p381
      %p383 = pneg %p382
      // Predicated region
      $region9: #{forward.1} parent=5 // pred_check
        _
      $region10: #{forward.1} parent=5 // pred_check_branch
        %385 = sbr.rel (%p382) target = $region12
      $region11: #{forward.1} parent=5 // pred_region
        %s386 = ssub.s32 %s33, 1
        // Predicated region
        $region13: #{forward.1} parent=11 // pred_check
          %p387 = pneg %p94
        $region14: #{forward.1} parent=11 // pred_check_branch
          %389 = sbr.rel (%p387) target = $region16
        $region15: #{forward.1} parent=11 // pred_region
          _
        $region16: #{forward.1} parent=11 // pred_fallthru
          _
        // Predicated region
        $region17: #{forward.1} parent=11 // pred_check
          %p390 = pneg %p115
        $region18: #{forward.1} parent=11 // pred_check_branch
          %392 = sbr.rel (%p390) target = $region20
        $region19: #{forward.1} parent=11 // pred_region
          _
        $region20: #{forward.1} parent=11 // pred_fallthru
          _
        // Predicated region
        $region21: #{forward.1} parent=11 // pred_check
          %p393 = pneg %p136
        $region22: #{forward.1} parent=11 // pred_check_branch
          %395 = sbr.rel (%p393) target = $region24
        $region23: #{forward.1} parent=11 // pred_region
          _
        $region24: #{forward.1} parent=11 // pred_fallthru
          _
        // Predicated region
        $region25: #{forward.1} parent=11 // pred_check
          %p396 = pneg %p157
        $region26: #{forward.1} parent=11 // pred_check_branch
          %398 = sbr.rel (%p396) target = $region28
        $region27: #{forward.1} parent=11 // pred_region
          _
        $region28: #{forward.1} parent=11 // pred_fallthru
          _
        // Predicated region
        $region29: #{forward.1} parent=11 // pred_check
          %p399 = pneg %p178
        $region30: #{forward.1} parent=11 // pred_check_branch
          %401 = sbr.rel (%p399) target = $region32
        $region31: #{forward.1} parent=11 // pred_region
          %403 = vsyncadd [#allocation6], 0
          %s404 = sshll.u32 %s6, 4
          %s405 = int_to_ptr.hbm [resolvable:$true] %s404
          %s406 = sshll.u32 [#allocation5], 4
          %s407 = int_to_ptr.vmem [resolvable:$true] %s406
          %412 = dma.hbm_to_vmem [thread:$0]  %s405, 16384, %s407, [#allocation6], 512, 512, 32
        $region32: #{forward.1} parent=11 // pred_fallthru
          _
        // Predicated region
        $region33: #{forward.1} parent=11 // pred_check
          %p413 = pneg %p199
        $region34: #{forward.1} parent=11 // pred_check_branch
          %415 = sbr.rel (%p413) target = $region36
        $region35: #{forward.1} parent=11 // pred_region
          _
        $region36: #{forward.1} parent=11 // pred_fallthru
          _
        // Predicated region
        $region37: #{forward.1} parent=11 // pred_check
          %p416 = pneg %p220
        $region38: #{forward.1} parent=11 // pred_check_branch
          %418 = sbr.rel (%p416) target = $region40
        $region39: #{forward.1} parent=11 // pred_region
          %420 = vsyncadd [#allocation8], 0
          %s421 = sshll.u32 %s8, 4
          %s422 = int_to_ptr.hbm [resolvable:$true] %s421
          %s423 = sshll.u32 [#allocation7], 4
          %s424 = int_to_ptr.vmem [resolvable:$true] %s423
          %429 = dma.hbm_to_vmem [thread:$0]  %s422, 16384, %s424, [#allocation8], 256, 256, 16
        $region40: #{forward.1} parent=11 // pred_fallthru
          _
        // Predicated region
        $region41: #{forward.1} parent=11 // pred_check
          %p430 = pneg %p241
        $region42: #{forward.1} parent=11 // pred_check_branch
          %432 = sbr.rel (%p430) target = $region44
        $region43: #{forward.1} parent=11 // pred_region
          %434 = vsyncadd [#allocation8], 0
          %s435 = sshll.u32 %s9, 4
          %s436 = int_to_ptr.hbm [resolvable:$true] %s435
          %s437 = sshll.u32 [#allocation9], 4
          %s438 = int_to_ptr.vmem [resolvable:$true] %s437
          %443 = dma.hbm_to_vmem [thread:$0]  %s436, 512, %s438, [#allocation8], 256, 256, 16
        $region44: #{forward.1} parent=11 // pred_fallthru
          _
        // Predicated region
        $region45: #{forward.1} parent=11 // pred_check
          %p444 = pneg %p262
        $region46: #{forward.1} parent=11 // pred_check_branch
          %446 = sbr.rel (%p444) target = $region48
        $region47: #{forward.1} parent=11 // pred_region
          %448 = vsyncadd [#allocation11], 0
          %s450 = sshll.u32 %s10, 4
          %s451 = int_to_ptr.hbm [resolvable:$true] %s450
          %s452 = sshll.u32 [#allocation10], 4
          %s453 = int_to_ptr.vmem [resolvable:$true] %s452
          %455 = dma.hbm_to_vmem [thread:$0]  %s451, 32, %s453, [#allocation11]
        $region48: #{forward.1} parent=11 // pred_fallthru
          _
        // Predicated region
        $region49: #{forward.1} parent=11 // pred_check
          %p456 = pneg %p283
        $region50: #{forward.1} parent=11 // pred_check_branch
          %458 = sbr.rel (%p456) target = $region52
        $region51: #{forward.1} parent=11 // pred_region
          %460 = vsyncadd [#allocation11], 0
          %s461 = sshll.u32 %s11, 4
          %s462 = int_to_ptr.hbm [resolvable:$true] %s461
          %s463 = sshll.u32 [#allocation12], 4
          %s464 = int_to_ptr.vmem [resolvable:$true] %s463
          %469 = dma.hbm_to_vmem [thread:$0]  %s462, 4096, %s464, [#allocation11], 128, 128, 8
        $region52: #{forward.1} parent=11 // pred_fallthru
          _
        // Predicated region
        $region53: #{forward.1} parent=11 // pred_check
          %p470 = pneg %p304
        $region54: #{forward.1} parent=11 // pred_check_branch
          %472 = sbr.rel (%p470) target = $region56
        $region55: #{forward.1} parent=11 // pred_region
          %474 = vsyncadd [#allocation14], 0
          %s476 = sshll.u32 %s12, 4
          %s477 = int_to_ptr.hbm [resolvable:$true] %s476
          %s478 = sshll.u32 [#allocation13], 4
          %s479 = int_to_ptr.vmem [resolvable:$true] %s478
          %481 = dma.hbm_to_vmem [thread:$0]  %s477, 16, %s479, [#allocation14]
        $region56: #{forward.1} parent=11 // pred_fallthru
          _
        // Predicated region
        $region57: #{forward.1} parent=11 // pred_check
          %p482 = pneg %p325
        $region58: #{forward.1} parent=11 // pred_check_branch
          %484 = sbr.rel (%p482) target = $region60
        $region59: #{forward.1} parent=11 // pred_region
          _
        $region60: #{forward.1} parent=11 // pred_fallthru
          _
        // Predicated region
        $region61: #{forward.1} parent=11 // pred_check
          %p485 = pneg %p346
        $region62: #{forward.1} parent=11 // pred_check_branch
          %487 = sbr.rel (%p485) target = $region64
        $region63: #{forward.1} parent=11 // pred_region
          %489 = vsyncadd [#allocation14], 0
          %s491 = sshll.u32 %s14, 4
          %s492 = int_to_ptr.hbm [resolvable:$true] %s491
          %s493 = sshll.u32 [#allocation15], 4
          %s494 = int_to_ptr.vmem [resolvable:$true] %s493
          %496 = dma.hbm_to_vmem [thread:$0]  %s492, 16, %s494, [#allocation14]
        $region64: #{forward.1} parent=11 // pred_fallthru
          _
      $region12: #{forward.1} parent=5 // pred_fallthru
        _
      %p497 = scmp.lt.s32.totalorder %s33, 2
      // Predicated region
      $region65: #{forward.1} parent=5 // pred_check
        %p498 = pneg %p497
      $region66: #{forward.1} parent=5 // pred_check_branch
        %500 = sbr.rel (%p498) target = $region68
      $region67: #{forward.1} parent=5 // pred_region
        // Predicated region
        $region69: #{forward.1} parent=67 // pred_check
          %p501 = pneg %p67
        $region70: #{forward.1} parent=67 // pred_check_branch
          %503 = sbr.rel (%p501) target = $region72
        $region71: #{forward.1} parent=67 // pred_region
          %s504 = smul.u32 8, %s41
          %p505 = scmp.lt.s32.totalorder %s40, 1
          %s506 = scalar_select %p505, %s40, 1
          %p507 = scmp.lt.s32.totalorder %s504, 7
          %s508 = scalar_select %p507, %s504, 7
          %s509 = smul.addr %s506, 8
          %s510 = sadd.s32 %s508, %s509
          %s511 = smul.addr %s510, 8
          %s512 = scalar_lea.vmem %s1, %s511
          %s513 = smul.u32 8, %s41
        $region72: #{forward.1} parent=67 // pred_fallthru
          _
      $region68: #{forward.1} parent=5 // pred_fallthru
        _
      %p514 = scmp.le.s32.totalorder 1, %s33
      %p515 = scmp.lt.s32.totalorder %s33, 3
      %p516 = pnand %p514, %p515
      %p517 = pneg %p516
      // Predicated region
      $region73: #{forward.1} parent=5 // pred_check
        _
      $region74: #{forward.1} parent=5 // pred_check_branch
        %519 = sbr.rel (%p516) target = $region76
      $region75: #{forward.1} parent=5 // pred_region
        %s520 = ssub.s32 %s33, 1
        // Predicated region
        $region77: #{forward.1} parent=75 // pred_check
          %p521 = pneg %p178
        $region78: #{forward.1} parent=75 // pred_check_branch
          %523 = sbr.rel (%p521) target = $region80
        $region79: #{forward.1} parent=75 // pred_region
          %525 = dma.done [#allocation6], 16384
        $region80: #{forward.1} parent=75 // pred_fallthru
          _
        // Predicated region
        $region81: #{forward.1} parent=75 // pred_check
          %p526 = pneg %p220
        $region82: #{forward.1} parent=75 // pred_check_branch
          %528 = sbr.rel (%p526) target = $region84
        $region83: #{forward.1} parent=75 // pred_region
          %530 = dma.done [#allocation8], 16384
        $region84: #{forward.1} parent=75 // pred_fallthru
          _
        // Predicated region
        $region85: #{forward.1} parent=75 // pred_check
          %p531 = pneg %p241
        $region86: #{forward.1} parent=75 // pred_check_branch
          %533 = sbr.rel (%p531) target = $region88
        $region87: #{forward.1} parent=75 // pred_region
          %535 = dma.done [#allocation8], 512
        $region88: #{forward.1} parent=75 // pred_fallthru
          _
        // Predicated region
        $region89: #{forward.1} parent=75 // pred_check
          %p536 = pneg %p262
        $region90: #{forward.1} parent=75 // pred_check_branch
          %538 = sbr.rel (%p536) target = $region92
        $region91: #{forward.1} parent=75 // pred_region
          %540 = dma.done [#allocation11], 32
        $region92: #{forward.1} parent=75 // pred_fallthru
          _
        // Predicated region
        $region93: #{forward.1} parent=75 // pred_check
          %p541 = pneg %p283
        $region94: #{forward.1} parent=75 // pred_check_branch
          %543 = sbr.rel (%p541) target = $region96
        $region95: #{forward.1} parent=75 // pred_region
          %545 = dma.done [#allocation11], 4096
        $region96: #{forward.1} parent=75 // pred_fallthru
          _
        // Predicated region
        $region97: #{forward.1} parent=75 // pred_check
          %p546 = pneg %p304
        $region98: #{forward.1} parent=75 // pred_check_branch
          %548 = sbr.rel (%p546) target = $region100
        $region99: #{forward.1} parent=75 // pred_region
          %550 = dma.done [#allocation14], 16
        $region100: #{forward.1} parent=75 // pred_fallthru
          _
        // Predicated region
        $region101: #{forward.1} parent=75 // pred_check
          %p551 = pneg %p346
        $region102: #{forward.1} parent=75 // pred_check_branch
          %553 = sbr.rel (%p551) target = $region104
        $region103: #{forward.1} parent=75 // pred_region
          %555 = dma.done [#allocation14], 16
        $region104: #{forward.1} parent=75 // pred_fallthru
          _
        %s556 = smul.u32 8, %s43
        %p557 = scmp.lt.s32.totalorder %s42, 1
        %s558 = scalar_select %p557, %s42, 1
        %p559 = scmp.lt.s32.totalorder %s556, 7
        %s560 = scalar_select %p559, %s556, 7
        %s561 = smul.addr %s558, 8
        %s562 = sadd.s32 %s560, %s561
        %s563 = smul.addr %s562, 8
        %s564 = scalar_lea.vmem %s1, %s563
        %p565 = pneg %p73
        %p566 = pneg %p70
        %p567 = pneg %p94
        %p568 = pneg %p91
        %p569 = pneg %p115
        %p570 = pneg %p112
        %p571 = pneg %p136
        %p572 = pneg %p133
        %p573 = pneg %p157
        %p574 = pneg %p154
        %p575 = pneg %p178
        %p576 = pneg %p175
        %p577 = pneg %p199
        %p578 = pneg %p196
        %p579 = pneg %p220
        %p580 = pneg %p217
        %p581 = pneg %p241
        %p582 = pneg %p238
        %p583 = pneg %p262
        %p584 = pneg %p259
        %p585 = pneg %p283
        %p586 = pneg %p280
        %p587 = pneg %p304
        %p588 = pneg %p301
        %p589 = pneg %p325
        %p590 = pneg %p322
        %p591 = pneg %p346
        %p592 = pneg %p343
        %p593 = pneg %p372
        %p594 = pneg %p369
        %p595 = scmp.lt.s32.totalorder %s42, 1
        %s596 = scalar_select %p595, %s42, 1
        %s597 = scalar_lea.vmem %s15, %s596
        %s598 = smul.u32 8, %s43
        %p599 = scmp.lt.s32.totalorder %s42, 1
        %s600 = scalar_select %p599, %s42, 1
        %p601 = scmp.lt.s32.totalorder %s598, 7
        %s602 = scalar_select %p601, %s598, 7
        %s603 = smul.addr %s600, 8
        %s604 = sadd.s32 %s602, %s603
        %s605 = smul.addr %s604, 8
        %s606 = scalar_lea.vmem %s1, %s605
        %s607 = smul.u32 8, %s43
        %p608 = scmp.lt.s32.totalorder %s42, 1
        %s609 = scalar_select %p608, %s42, 1
        %s610 = scalar_lea.vmem %s15, %s609
        %p611 = scmp.eq.s32.totalorder %s43, 0
        // Predicated region
        $region105: #{forward.1} parent=75 // pred_check
          %p612 = pneg %p611
        $region106: #{forward.1} parent=75 // pred_check_branch
          %614 = sbr.rel (%p612) target = $region108
        $region107: #{forward.1} parent=75 // pred_region
          %v615 = vlaneseq
          %vm616 = vcmp.ge.s32.totalorder %v615, 0
          %vm617 = vcmp.lt.s32.totalorder %v615, 512
          %vm618 = vmand %vm616, %vm617
          %619 = vst.msk [vmem:[#allocation2] sm:$0xf] %vm618, -inf
        $region108: #{forward.1} parent=75 // pred_fallthru
          _
        %v620 = vld [vmem:[%s606] sm:$0xff]
        %v621 = vld [vmem:[%s606 + $0x8] sm:$0xff]
        %v622 = vld [vmem:[%s606 + $0x10] sm:$0xff]
        %v623 = vld [vmem:[%s606 + $0x18] sm:$0xff]
        %v624 = vld [vmem:[%s606 + $0x20] sm:$0xff]
        %v625 = vld [vmem:[%s606 + $0x28] sm:$0xff]
        %v626 = vld [vmem:[%s606 + $0x30] sm:$0xff]
        %v627 = vld [vmem:[%s606 + $0x38] sm:$0xff]
        %v628 = vld [vmem:[%s2] sm:$0x7]
        %630 = vset.pattern.permute.xlu0 0
        %631 = vperm.xlu0 %630, %v620
        %v632 = vpop.permute.xlu0 %631
        %635 = vset.pattern.permute.xlu0 0
        %636 = vperm.xlu0 %635, %v621
        %v637 = vpop.permute.xlu0 %636
        %640 = vset.pattern.permute.xlu0 0
        %641 = vperm.xlu0 %640, %v622
        %v642 = vpop.permute.xlu0 %641
        %645 = vset.pattern.permute.xlu0 0
        %646 = vperm.xlu0 %645, %v623
        %v647 = vpop.permute.xlu0 %646
        %650 = vset.pattern.permute.xlu0 0
        %651 = vperm.xlu0 %650, %v624
        %v652 = vpop.permute.xlu0 %651
        %655 = vset.pattern.permute.xlu0 0
        %656 = vperm.xlu0 %655, %v625
        %v657 = vpop.permute.xlu0 %656
        %660 = vset.pattern.permute.xlu0 0
        %661 = vperm.xlu0 %660, %v626
        %v662 = vpop.permute.xlu0 %661
        %665 = vset.pattern.permute.xlu0 0
        %666 = vperm.xlu0 %665, %v627
        %v667 = vpop.permute.xlu0 %666
        %v669 = vperm.slane %v628, 0
        %v670 = vmul.f32 %v632, %v669
        %v671 = vmul.f32 %v637, %v669
        %v672 = vmul.f32 %v642, %v669
        %v673 = vmul.f32 %v647, %v669
        %v674 = vmul.f32 %v652, %v669
        %v675 = vmul.f32 %v657, %v669
        %v676 = vmul.f32 %v662, %v669
        %v677 = vmul.f32 %v667, %v669
        %678 = vset.pattern.permute.xlu0 1
        %679 = vperm.xlu0 %678, %v620
        %v680 = vpop.permute.xlu0 %679
        %682 = vset.pattern.permute.xlu0 1
        %683 = vperm.xlu0 %682, %v621
        %v684 = vpop.permute.xlu0 %683
        %686 = vset.pattern.permute.xlu0 1
        %687 = vperm.xlu0 %686, %v622
        %v688 = vpop.permute.xlu0 %687
        %690 = vset.pattern.permute.xlu0 1
        %691 = vperm.xlu0 %690, %v623
        %v692 = vpop.permute.xlu0 %691
        %694 = vset.pattern.permute.xlu0 1
        %695 = vperm.xlu0 %694, %v624
        %v696 = vpop.permute.xlu0 %695
        %698 = vset.pattern.permute.xlu0 1
        %699 = vperm.xlu0 %698, %v625
        %v700 = vpop.permute.xlu0 %699
        %702 = vset.pattern.permute.xlu0 1
        %703 = vperm.xlu0 %702, %v626
        %v704 = vpop.permute.xlu0 %703
        %706 = vset.pattern.permute.xlu0 1
        %707 = vperm.xlu0 %706, %v627
        %v708 = vpop.permute.xlu0 %707
        %v710 = vperm.slane %v628, 1
        %v711 = vmul.f32 %v680, %v710
        %v712 = vmul.f32 %v684, %v710
        %v713 = vmul.f32 %v688, %v710
        %v714 = vmul.f32 %v692, %v710
        %v715 = vmul.f32 %v696, %v710
        %v716 = vmul.f32 %v700, %v710
        %v717 = vmul.f32 %v704, %v710
        %v718 = vmul.f32 %v708, %v710
        %v719 = vadd.f32 %v670, %v711
        %v720 = vadd.f32 %v671, %v712
        %v721 = vadd.f32 %v672, %v713
        %v722 = vadd.f32 %v673, %v714
        %v723 = vadd.f32 %v674, %v715
        %v724 = vadd.f32 %v675, %v716
        %v725 = vadd.f32 %v676, %v717
        %v726 = vadd.f32 %v677, %v718
        %727 = vset.pattern.permute.xlu0 2
        %728 = vperm.xlu0 %727, %v620
        %v729 = vpop.permute.xlu0 %728
        %731 = vset.pattern.permute.xlu0 2
        %732 = vperm.xlu0 %731, %v621
        %v733 = vpop.permute.xlu0 %732
        %735 = vset.pattern.permute.xlu0 2
        %736 = vperm.xlu0 %735, %v622
        %v737 = vpop.permute.xlu0 %736
        %739 = vset.pattern.permute.xlu0 2
        %740 = vperm.xlu0 %739, %v623
        %v741 = vpop.permute.xlu0 %740
        %743 = vset.pattern.permute.xlu0 2
        %744 = vperm.xlu0 %743, %v624
        %v745 = vpop.permute.xlu0 %744
        %747 = vset.pattern.permute.xlu0 2
        %748 = vperm.xlu0 %747, %v625
        %v749 = vpop.permute.xlu0 %748
        %751 = vset.pattern.permute.xlu0 2
        %752 = vperm.xlu0 %751, %v626
        %v753 = vpop.permute.xlu0 %752
        %755 = vset.pattern.permute.xlu0 2
        %756 = vperm.xlu0 %755, %v627
        %v757 = vpop.permute.xlu0 %756
        %v759 = vperm.slane %v628, 2
        %v760 = vmul.f32 %v729, %v759
        %v761 = vmul.f32 %v733, %v759
        %v762 = vmul.f32 %v737, %v759
        %v763 = vmul.f32 %v741, %v759
        %v764 = vmul.f32 %v745, %v759
        %v765 = vmul.f32 %v749, %v759
        %v766 = vmul.f32 %v753, %v759
        %v767 = vmul.f32 %v757, %v759
        %v768 = vadd.f32 %v719, %v760
        %v769 = vadd.f32 %v720, %v761
        %v770 = vadd.f32 %v721, %v762
        %v771 = vadd.f32 %v722, %v763
        %v772 = vadd.f32 %v723, %v764
        %v773 = vadd.f32 %v724, %v765
        %v774 = vadd.f32 %v725, %v766
        %v775 = vadd.f32 %v726, %v767
        %v776 = vld [vmem:[%s3] sm:$0x1]
        %v778 = vperm.slane %v776, 0
        %v780 = vadd.f32 %v768, %v778
        %v781 = vadd.f32 %v769, %v778
        %v782 = vadd.f32 %v770, %v778
        %v783 = vadd.f32 %v771, %v778
        %v784 = vadd.f32 %v772, %v778
        %v785 = vadd.f32 %v773, %v778
        %v786 = vadd.f32 %v774, %v778
        %v787 = vadd.f32 %v775, %v778
        %v788 = vmax.f32 %v780, 0.0
        %v789 = vmax.f32 %v781, 0.0
        %v790 = vmax.f32 %v782, 0.0
        %v791 = vmax.f32 %v783, 0.0
        %v792 = vmax.f32 %v784, 0.0
        %v793 = vmax.f32 %v785, 0.0
        %v794 = vmax.f32 %v786, 0.0
        %v795 = vmax.f32 %v787, 0.0
        %v796 = vld [vmem:[%s4] sm:$0xff]
        %v797 = vld [vmem:[%s4 + $0x8] sm:$0xff]
        %v798 = vld [vmem:[%s4 + $0x10] sm:$0xff]
        %v799 = vld [vmem:[%s4 + $0x18] sm:$0xff]
        %v800 = vld [vmem:[%s4 + $0x20] sm:$0xff]
        %v801 = vld [vmem:[%s4 + $0x28] sm:$0xff]
        %v802 = vld [vmem:[%s4 + $0x30] sm:$0xff]
        %v803 = vld [vmem:[%s4 + $0x38] sm:$0xff]
        %v804 = vld [vmem:[%s4 + $0x40] sm:$0xff]
        %v805 = vld [vmem:[%s4 + $0x48] sm:$0xff]
        %v806 = vld [vmem:[%s4 + $0x50] sm:$0xff]
        %v807 = vld [vmem:[%s4 + $0x58] sm:$0xff]
        %v808 = vld [vmem:[%s4 + $0x60] sm:$0xff]
        %v809 = vld [vmem:[%s4 + $0x68] sm:$0xff]
        %v810 = vld [vmem:[%s4 + $0x70] sm:$0xff]
        %v811 = vld [vmem:[%s4 + $0x78] sm:$0xff]
        %v812 = vld [vmem:[%s4 + $0x80] sm:$0xff]
        %v813 = vld [vmem:[%s4 + $0x88] sm:$0xff]
        %v814 = vld [vmem:[%s4 + $0x90] sm:$0xff]
        %v815 = vld [vmem:[%s4 + $0x98] sm:$0xff]
        %v816 = vld [vmem:[%s4 + $0xa0] sm:$0xff]
        %v817 = vld [vmem:[%s4 + $0xa8] sm:$0xff]
        %v818 = vld [vmem:[%s4 + $0xb0] sm:$0xff]
        %v819 = vld [vmem:[%s4 + $0xb8] sm:$0xff]
        %v820 = vld [vmem:[%s4 + $0xc0] sm:$0xff]
        %v821 = vld [vmem:[%s4 + $0xc8] sm:$0xff]
        %v822 = vld [vmem:[%s4 + $0xd0] sm:$0xff]
        %v823 = vld [vmem:[%s4 + $0xd8] sm:$0xff]
        %v824 = vld [vmem:[%s4 + $0xe0] sm:$0xff]
        %v825 = vld [vmem:[%s4 + $0xe8] sm:$0xff]
        %v826 = vld [vmem:[%s4 + $0xf0] sm:$0xff]
        %v827 = vld [vmem:[%s4 + $0xf8] sm:$0xff]
        %v828 = vld [vmem:[%s5] sm:$0x3]
        %v830 = vperm.slane %v828, 0
        %v831 = vperm.slane %v828, 1
        %834 = vmatpush.msra.mxu0 %v826
        %835 = vmatpush.msra.mxu0 %v824
        %836 = vmatpush.msra.mxu0 %v822
        %837 = vmatpush.msra.mxu0 %v820
        %838 = vmatpush.msra.mxu0 %v818
        %839 = vmatpush.msra.mxu0 %v816
        %840 = vmatpush.msra.mxu0 %v814
        %841 = vmatpush.msra.mxu0 %v812
        %842 = vmatpush.msra.mxu0 %v810
        %843 = vmatpush.msra.mxu0 %v808
        %844 = vmatpush.msra.mxu0 %v806
        %845 = vmatpush.msra.mxu0 %v804
        %846 = vmatpush.msra.mxu0 %v802
        %847 = vmatpush.msra.mxu0 %v800
        %848 = vmatpush.msra.mxu0 %v798
        %849 = vmatpush.msra.mxu0 %v796
        %850 = vmatmul.f32.gmra.mxu0 %v788
        %v851 = vpop.f32.mrf.mxu0
        %v852 = vadd.f32 %v830, %v851
        %853 = vmatmul.f32.gmra.mxu0 %v789
        %v854 = vpop.f32.mrf.mxu0
        %v855 = vadd.f32 %v830, %v854
        %856 = vmatmul.f32.gmra.mxu0 %v790
        %v857 = vpop.f32.mrf.mxu0
        %v858 = vadd.f32 %v830, %v857
        %859 = vmatmul.f32.gmra.mxu0 %v791
        %v860 = vpop.f32.mrf.mxu0
        %v861 = vadd.f32 %v830, %v860
        %862 = vmatmul.f32.gmra.mxu0 %v792
        %v863 = vpop.f32.mrf.mxu0
        %v864 = vadd.f32 %v830, %v863
        %865 = vmatmul.f32.gmra.mxu0 %v793
        %v866 = vpop.f32.mrf.mxu0
        %v867 = vadd.f32 %v830, %v866
        %868 = vmatmul.f32.gmra.mxu0 %v794
        %v869 = vpop.f32.mrf.mxu0
        %v870 = vadd.f32 %v830, %v869
        %871 = vmatmul.f32.gmra.mxu0 %v795
        %v872 = vpop.f32.mrf.mxu0
        %v873 = vadd.f32 %v830, %v872
        %874 = vdwg.mxu0
        %875 = vmatpush.msra.mxu0 %v827
        %876 = vmatpush.msra.mxu0 %v825
        %877 = vmatpush.msra.mxu0 %v823
        %878 = vmatpush.msra.mxu0 %v821
        %879 = vmatpush.msra.mxu0 %v819
        %880 = vmatpush.msra.mxu0 %v817
        %881 = vmatpush.msra.mxu0 %v815
        %882 = vmatpush.msra.mxu0 %v813
        %883 = vmatpush.msra.mxu0 %v811
        %884 = vmatpush.msra.mxu0 %v809
        %885 = vmatpush.msra.mxu0 %v807
        %886 = vmatpush.msra.mxu0 %v805
        %887 = vmatpush.msra.mxu0 %v803
        %888 = vmatpush.msra.mxu0 %v801
        %889 = vmatpush.msra.mxu0 %v799
        %890 = vmatpush.msra.mxu0 %v797
        %891 = vmatmul.f32.gmra.mxu0 %v788
        %v892 = vpop.f32.mrf.mxu0
        %v893 = vadd.f32 %v831, %v892
        %894 = vmatmul.f32.gmra.mxu0 %v789
        %v895 = vpop.f32.mrf.mxu0
        %v896 = vadd.f32 %v831, %v895
        %897 = vmatmul.f32.gmra.mxu0 %v790
        %v898 = vpop.f32.mrf.mxu0
        %v899 = vadd.f32 %v831, %v898
        %900 = vmatmul.f32.gmra.mxu0 %v791
        %v901 = vpop.f32.mrf.mxu0
        %v902 = vadd.f32 %v831, %v901
        %903 = vmatmul.f32.gmra.mxu0 %v792
        %v904 = vpop.f32.mrf.mxu0
        %v905 = vadd.f32 %v831, %v904
        %906 = vmatmul.f32.gmra.mxu0 %v793
        %v907 = vpop.f32.mrf.mxu0
        %v908 = vadd.f32 %v831, %v907
        %909 = vmatmul.f32.gmra.mxu0 %v794
        %v910 = vpop.f32.mrf.mxu0
        %v911 = vadd.f32 %v831, %v910
        %912 = vmatmul.f32.gmra.mxu0 %v795
        %v913 = vpop.f32.mrf.mxu0
        %v914 = vadd.f32 %v831, %v913
        %915 = vdwg.mxu0
        %v916 = vmax.f32 %v852, 0.0
        %v917 = vmax.f32 %v893, 0.0
        %v918 = vmax.f32 %v855, 0.0
        %v919 = vmax.f32 %v896, 0.0
        %v920 = vmax.f32 %v858, 0.0
        %v921 = vmax.f32 %v899, 0.0
        %v922 = vmax.f32 %v861, 0.0
        %v923 = vmax.f32 %v902, 0.0
        %v924 = vmax.f32 %v864, 0.0
        %v925 = vmax.f32 %v905, 0.0
        %v926 = vmax.f32 %v867, 0.0
        %v927 = vmax.f32 %v908, 0.0
        %v928 = vmax.f32 %v870, 0.0
        %v929 = vmax.f32 %v911, 0.0
        %v930 = vmax.f32 %v873, 0.0
        %v931 = vmax.f32 %v914, 0.0
        %v932 = vld [vmem:[#allocation5] sm:$0xff]
        %v933 = vld [vmem:[#allocation5 + $0x8] sm:$0xff]
        %v934 = vld [vmem:[#allocation5 + $0x10] sm:$0xff]
        %v935 = vld [vmem:[#allocation5 + $0x18] sm:$0xff]
        %v936 = vld [vmem:[#allocation5 + $0x20] sm:$0xff]
        %v937 = vld [vmem:[#allocation5 + $0x28] sm:$0xff]
        %v938 = vld [vmem:[#allocation5 + $0x30] sm:$0xff]
        %v939 = vld [vmem:[#allocation5 + $0x38] sm:$0xff]
        %v940 = vld [vmem:[#allocation5 + $0x40] sm:$0xff]
        %v941 = vld [vmem:[#allocation5 + $0x48] sm:$0xff]
        %v942 = vld [vmem:[#allocation5 + $0x50] sm:$0xff]
        %v943 = vld [vmem:[#allocation5 + $0x58] sm:$0xff]
        %v944 = vld [vmem:[#allocation5 + $0x60] sm:$0xff]
        %v945 = vld [vmem:[#allocation5 + $0x68] sm:$0xff]
        %v946 = vld [vmem:[#allocation5 + $0x70] sm:$0xff]
        %v947 = vld [vmem:[#allocation5 + $0x78] sm:$0xff]
        %v948 = vld [vmem:[#allocation5 + $0x80] sm:$0xff]
        %v949 = vld [vmem:[#allocation5 + $0x88] sm:$0xff]
        %v950 = vld [vmem:[#allocation5 + $0x90] sm:$0xff]
        %v951 = vld [vmem:[#allocation5 + $0x98] sm:$0xff]
        %v952 = vld [vmem:[#allocation5 + $0xa0] sm:$0xff]
        %v953 = vld [vmem:[#allocation5 + $0xa8] sm:$0xff]
        %v954 = vld [vmem:[#allocation5 + $0xb0] sm:$0xff]
        %v955 = vld [vmem:[#allocation5 + $0xb8] sm:$0xff]
        %v956 = vld [vmem:[#allocation5 + $0xc0] sm:$0xff]
        %v957 = vld [vmem:[#allocation5 + $0xc8] sm:$0xff]
        %v958 = vld [vmem:[#allocation5 + $0xd0] sm:$0xff]
        %v959 = vld [vmem:[#allocation5 + $0xd8] sm:$0xff]
        %v960 = vld [vmem:[#allocation5 + $0xe0] sm:$0xff]
        %v961 = vld [vmem:[#allocation5 + $0xe8] sm:$0xff]
        %v962 = vld [vmem:[#allocation5 + $0xf0] sm:$0xff]
        %v963 = vld [vmem:[#allocation5 + $0xf8] sm:$0xff]
        %v964 = vld [vmem:[#allocation5 + $0x100] sm:$0xff]
        %v965 = vld [vmem:[#allocation5 + $0x108] sm:$0xff]
        %v966 = vld [vmem:[#allocation5 + $0x110] sm:$0xff]
        %v967 = vld [vmem:[#allocation5 + $0x118] sm:$0xff]
        %v968 = vld [vmem:[#allocation5 + $0x120] sm:$0xff]
        %v969 = vld [vmem:[#allocation5 + $0x128] sm:$0xff]
        %v970 = vld [vmem:[#allocation5 + $0x130] sm:$0xff]
        %v971 = vld [vmem:[#allocation5 + $0x138] sm:$0xff]
        %v972 = vld [vmem:[#allocation5 + $0x140] sm:$0xff]
        %v973 = vld [vmem:[#allocation5 + $0x148] sm:$0xff]
        %v974 = vld [vmem:[#allocation5 + $0x150] sm:$0xff]
        %v975 = vld [vmem:[#allocation5 + $0x158] sm:$0xff]
        %v976 = vld [vmem:[#allocation5 + $0x160] sm:$0xff]
        %v977 = vld [vmem:[#allocation5 + $0x168] sm:$0xff]
        %v978 = vld [vmem:[#allocation5 + $0x170] sm:$0xff]
        %v979 = vld [vmem:[#allocation5 + $0x178] sm:$0xff]
        %v980 = vld [vmem:[#allocation5 + $0x180] sm:$0xff]
        %v981 = vld [vmem:[#allocation5 + $0x188] sm:$0xff]
        %v982 = vld [vmem:[#allocation5 + $0x190] sm:$0xff]
        %v983 = vld [vmem:[#allocation5 + $0x198] sm:$0xff]
        %v984 = vld [vmem:[#allocation5 + $0x1a0] sm:$0xff]
        %v985 = vld [vmem:[#allocation5 + $0x1a8] sm:$0xff]
        %v986 = vld [vmem:[#allocation5 + $0x1b0] sm:$0xff]
        %v987 = vld [vmem:[#allocation5 + $0x1b8] sm:$0xff]
        %v988 = vld [vmem:[#allocation5 + $0x1c0] sm:$0xff]
        %v989 = vld [vmem:[#allocation5 + $0x1c8] sm:$0xff]
        %v990 = vld [vmem:[#allocation5 + $0x1d0] sm:$0xff]
        %v991 = vld [vmem:[#allocation5 + $0x1d8] sm:$0xff]
        %v992 = vld [vmem:[#allocation5 + $0x1e0] sm:$0xff]
        %v993 = vld [vmem:[#allocation5 + $0x1e8] sm:$0xff]
        %v994 = vld [vmem:[#allocation5 + $0x1f0] sm:$0xff]
        %v995 = vld [vmem:[#allocation5 + $0x1f8] sm:$0xff]
        %v996 = vld [vmem:[#allocation5 + $0x200] sm:$0xff]
        %v997 = vld [vmem:[#allocation5 + $0x208] sm:$0xff]
        %v998 = vld [vmem:[#allocation5 + $0x210] sm:$0xff]
        %v999 = vld [vmem:[#allocation5 + $0x218] sm:$0xff]
        %v1000 = vld [vmem:[#allocation5 + $0x220] sm:$0xff]
        %v1001 = vld [vmem:[#allocation5 + $0x228] sm:$0xff]
        %v1002 = vld [vmem:[#allocation5 + $0x230] sm:$0xff]
        %v1003 = vld [vmem:[#allocation5 + $0x238] sm:$0xff]
        %v1004 = vld [vmem:[#allocation5 + $0x240] sm:$0xff]
        %v1005 = vld [vmem:[#allocation5 + $0x248] sm:$0xff]
        %v1006 = vld [vmem:[#allocation5 + $0x250] sm:$0xff]
        %v1007 = vld [vmem:[#allocation5 + $0x258] sm:$0xff]
        %v1008 = vld [vmem:[#allocation5 + $0x260] sm:$0xff]
        %v1009 = vld [vmem:[#allocation5 + $0x268] sm:$0xff]
        %v1010 = vld [vmem:[#allocation5 + $0x270] sm:$0xff]
        %v1011 = vld [vmem:[#allocation5 + $0x278] sm:$0xff]
        %v1012 = vld [vmem:[#allocation5 + $0x280] sm:$0xff]
        %v1013 = vld [vmem:[#allocation5 + $0x288] sm:$0xff]
        %v1014 = vld [vmem:[#allocation5 + $0x290] sm:$0xff]
        %v1015 = vld [vmem:[#allocation5 + $0x298] sm:$0xff]
        %v1016 = vld [vmem:[#allocation5 + $0x2a0] sm:$0xff]
        %v1017 = vld [vmem:[#allocation5 + $0x2a8] sm:$0xff]
        %v1018 = vld [vmem:[#allocation5 + $0x2b0] sm:$0xff]
        %v1019 = vld [vmem:[#allocation5 + $0x2b8] sm:$0xff]
        %v1020 = vld [vmem:[#allocation5 + $0x2c0] sm:$0xff]
        %v1021 = vld [vmem:[#allocation5 + $0x2c8] sm:$0xff]
        %v1022 = vld [vmem:[#allocation5 + $0x2d0] sm:$0xff]
        %v1023 = vld [vmem:[#allocation5 + $0x2d8] sm:$0xff]
        %v1024 = vld [vmem:[#allocation5 + $0x2e0] sm:$0xff]
        %v1025 = vld [vmem:[#allocation5 + $0x2e8] sm:$0xff]
        %v1026 = vld [vmem:[#allocation5 + $0x2f0] sm:$0xff]
        %v1027 = vld [vmem:[#allocation5 + $0x2f8] sm:$0xff]
        %v1028 = vld [vmem:[#allocation5 + $0x300] sm:$0xff]
        %v1029 = vld [vmem:[#allocation5 + $0x308] sm:$0xff]
        %v1030 = vld [vmem:[#allocation5 + $0x310] sm:$0xff]
        %v1031 = vld [vmem:[#allocation5 + $0x318] sm:$0xff]
        %v1032 = vld [vmem:[#allocation5 + $0x320] sm:$0xff]
        %v1033 = vld [vmem:[#allocation5 + $0x328] sm:$0xff]
        %v1034 = vld [vmem:[#allocation5 + $0x330] sm:$0xff]
        %v1035 = vld [vmem:[#allocation5 + $0x338] sm:$0xff]
        %v1036 = vld [vmem:[#allocation5 + $0x340] sm:$0xff]
        %v1037 = vld [vmem:[#allocation5 + $0x348] sm:$0xff]
        %v1038 = vld [vmem:[#allocation5 + $0x350] sm:$0xff]
        %v1039 = vld [vmem:[#allocation5 + $0x358] sm:$0xff]
        %v1040 = vld [vmem:[#allocation5 + $0x360] sm:$0xff]
        %v1041 = vld [vmem:[#allocation5 + $0x368] sm:$0xff]
        %v1042 = vld [vmem:[#allocation5 + $0x370] sm:$0xff]
        %v1043 = vld [vmem:[#allocation5 + $0x378] sm:$0xff]
        %v1044 = vld [vmem:[#allocation5 + $0x380] sm:$0xff]
        %v1045 = vld [vmem:[#allocation5 + $0x388] sm:$0xff]
        %v1046 = vld [vmem:[#allocation5 + $0x390] sm:$0xff]
        %v1047 = vld [vmem:[#allocation5 + $0x398] sm:$0xff]
        %v1048 = vld [vmem:[#allocation5 + $0x3a0] sm:$0xff]
        %v1049 = vld [vmem:[#allocation5 + $0x3a8] sm:$0xff]
        %v1050 = vld [vmem:[#allocation5 + $0x3b0] sm:$0xff]
        %v1051 = vld [vmem:[#allocation5 + $0x3b8] sm:$0xff]
        %v1052 = vld [vmem:[#allocation5 + $0x3c0] sm:$0xff]
        %v1053 = vld [vmem:[#allocation5 + $0x3c8] sm:$0xff]
        %v1054 = vld [vmem:[#allocation5 + $0x3d0] sm:$0xff]
        %v1055 = vld [vmem:[#allocation5 + $0x3d8] sm:$0xff]
        %v1056 = vld [vmem:[#allocation5 + $0x3e0] sm:$0xff]
        %v1057 = vld [vmem:[#allocation5 + $0x3e8] sm:$0xff]
        %v1058 = vld [vmem:[#allocation5 + $0x3f0] sm:$0xff]
        %v1059 = vld [vmem:[#allocation5 + $0x3f8] sm:$0xff]
        %v1060 = vld [vmem:[%s7] sm:$0xf]
        %v1062 = vperm.slane %v1060, 0
        %v1063 = vperm.slane %v1060, 1
        %v1064 = vperm.slane %v1060, 2
        %v1065 = vperm.slane %v1060, 3
        %1070 = vmatpush.msra.mxu0 %v992
        %1071 = vmatpush.msra.mxu0 %v988
        %1072 = vmatpush.msra.mxu0 %v984
        %1073 = vmatpush.msra.mxu0 %v980
        %1074 = vmatpush.msra.mxu0 %v976
        %1075 = vmatpush.msra.mxu0 %v972
        %1076 = vmatpush.msra.mxu0 %v968
        %1077 = vmatpush.msra.mxu0 %v964
        %1078 = vmatpush.msra.mxu0 %v960
        %1079 = vmatpush.msra.mxu0 %v956
        %1080 = vmatpush.msra.mxu0 %v952
        %1081 = vmatpush.msra.mxu0 %v948
        %1082 = vmatpush.msra.mxu0 %v944
        %1083 = vmatpush.msra.mxu0 %v940
        %1084 = vmatpush.msra.mxu0 %v936
        %1085 = vmatpush.msra.mxu0 %v932
        %1086 = vmatmul.f32.gmra.mxu0 %v916
        %v1087 = vpop.f32.mrf.mxu0
        %v1088 = vadd.f32 %v1062, %v1087
        %1089 = vmatmul.f32.gmra.mxu0 %v918
        %v1090 = vpop.f32.mrf.mxu0
        %v1091 = vadd.f32 %v1062, %v1090
        %1092 = vmatmul.f32.gmra.mxu0 %v920
        %v1093 = vpop.f32.mrf.mxu0
        %v1094 = vadd.f32 %v1062, %v1093
        %1095 = vmatmul.f32.gmra.mxu0 %v922
        %v1096 = vpop.f32.mrf.mxu0
        %v1097 = vadd.f32 %v1062, %v1096
        %1098 = vmatmul.f32.gmra.mxu0 %v924
        %v1099 = vpop.f32.mrf.mxu0
        %v1100 = vadd.f32 %v1062, %v1099
        %1101 = vmatmul.f32.gmra.mxu0 %v926
        %v1102 = vpop.f32.mrf.mxu0
        %v1103 = vadd.f32 %v1062, %v1102
        %1104 = vmatmul.f32.gmra.mxu0 %v928
        %v1105 = vpop.f32.mrf.mxu0
        %v1106 = vadd.f32 %v1062, %v1105
        %1107 = vmatmul.f32.gmra.mxu0 %v930
        %v1108 = vpop.f32.mrf.mxu0
        %v1109 = vadd.f32 %v1062, %v1108
        %1110 = vdwg.mxu0
        %1111 = vmatpush.msra.mxu0 %v1056
        %1112 = vmatpush.msra.mxu0 %v1052
        %1113 = vmatpush.msra.mxu0 %v1048
        %1114 = vmatpush.msra.mxu0 %v1044
        %1115 = vmatpush.msra.mxu0 %v1040
        %1116 = vmatpush.msra.mxu0 %v1036
        %1117 = vmatpush.msra.mxu0 %v1032
        %1118 = vmatpush.msra.mxu0 %v1028
        %1119 = vmatpush.msra.mxu0 %v1024
        %1120 = vmatpush.msra.mxu0 %v1020
        %1121 = vmatpush.msra.mxu0 %v1016
        %1122 = vmatpush.msra.mxu0 %v1012
        %1123 = vmatpush.msra.mxu0 %v1008
        %1124 = vmatpush.msra.mxu0 %v1004
        %1125 = vmatpush.msra.mxu0 %v1000
        %1126 = vmatpush.msra.mxu0 %v996
        %1127 = vmatmul.f32.gmra.mxu0 %v917
        %v1128 = vpop.f32.mrf.mxu0
        %v1129 = vadd.f32 %v1088, %v1128
        %1130 = vmatmul.f32.gmra.mxu0 %v919
        %v1131 = vpop.f32.mrf.mxu0
        %v1132 = vadd.f32 %v1091, %v1131
        %1133 = vmatmul.f32.gmra.mxu0 %v921
        %v1134 = vpop.f32.mrf.mxu0
        %v1135 = vadd.f32 %v1094, %v1134
        %1136 = vmatmul.f32.gmra.mxu0 %v923
        %v1137 = vpop.f32.mrf.mxu0
        %v1138 = vadd.f32 %v1097, %v1137
        %1139 = vmatmul.f32.gmra.mxu0 %v925
        %v1140 = vpop.f32.mrf.mxu0
        %v1141 = vadd.f32 %v1100, %v1140
        %1142 = vmatmul.f32.gmra.mxu0 %v927
        %v1143 = vpop.f32.mrf.mxu0
        %v1144 = vadd.f32 %v1103, %v1143
        %1145 = vmatmul.f32.gmra.mxu0 %v929
        %v1146 = vpop.f32.mrf.mxu0
        %v1147 = vadd.f32 %v1106, %v1146
        %1148 = vmatmul.f32.gmra.mxu0 %v931
        %v1149 = vpop.f32.mrf.mxu0
        %v1150 = vadd.f32 %v1109, %v1149
        %1151 = vdwg.mxu0
        %1152 = vmatpush.msra.mxu0 %v993
        %1153 = vmatpush.msra.mxu0 %v989
        %1154 = vmatpush.msra.mxu0 %v985
        %1155 = vmatpush.msra.mxu0 %v981
        %1156 = vmatpush.msra.mxu0 %v977
        %1157 = vmatpush.msra.mxu0 %v973
        %1158 = vmatpush.msra.mxu0 %v969
        %1159 = vmatpush.msra.mxu0 %v965
        %1160 = vmatpush.msra.mxu0 %v961
        %1161 = vmatpush.msra.mxu0 %v957
        %1162 = vmatpush.msra.mxu0 %v953
        %1163 = vmatpush.msra.mxu0 %v949
        %1164 = vmatpush.msra.mxu0 %v945
        %1165 = vmatpush.msra.mxu0 %v941
        %1166 = vmatpush.msra.mxu0 %v937
        %1167 = vmatpush.msra.mxu0 %v933
        %1168 = vmatmul.f32.gmra.mxu0 %v916
        %v1169 = vpop.f32.mrf.mxu0
        %v1170 = vadd.f32 %v1063, %v1169
        %1171 = vmatmul.f32.gmra.mxu0 %v918
        %v1172 = vpop.f32.mrf.mxu0
        %v1173 = vadd.f32 %v1063, %v1172
        %1174 = vmatmul.f32.gmra.mxu0 %v920
        %v1175 = vpop.f32.mrf.mxu0
        %v1176 = vadd.f32 %v1063, %v1175
        %1177 = vmatmul.f32.gmra.mxu0 %v922
        %v1178 = vpop.f32.mrf.mxu0
        %v1179 = vadd.f32 %v1063, %v1178
        %1180 = vmatmul.f32.gmra.mxu0 %v924
        %v1181 = vpop.f32.mrf.mxu0
        %v1182 = vadd.f32 %v1063, %v1181
        %1183 = vmatmul.f32.gmra.mxu0 %v926
        %v1184 = vpop.f32.mrf.mxu0
        %v1185 = vadd.f32 %v1063, %v1184
        %1186 = vmatmul.f32.gmra.mxu0 %v928
        %v1187 = vpop.f32.mrf.mxu0
        %v1188 = vadd.f32 %v1063, %v1187
        %1189 = vmatmul.f32.gmra.mxu0 %v930
        %v1190 = vpop.f32.mrf.mxu0
        %v1191 = vadd.f32 %v1063, %v1190
        %1192 = vdwg.mxu0
        %1193 = vmatpush.msra.mxu0 %v1057
        %1194 = vmatpush.msra.mxu0 %v1053
        %1195 = vmatpush.msra.mxu0 %v1049
        %1196 = vmatpush.msra.mxu0 %v1045
        %1197 = vmatpush.msra.mxu0 %v1041
        %1198 = vmatpush.msra.mxu0 %v1037
        %1199 = vmatpush.msra.mxu0 %v1033
        %1200 = vmatpush.msra.mxu0 %v1029
        %1201 = vmatpush.msra.mxu0 %v1025
        %1202 = vmatpush.msra.mxu0 %v1021
        %1203 = vmatpush.msra.mxu0 %v1017
        %1204 = vmatpush.msra.mxu0 %v1013
        %1205 = vmatpush.msra.mxu0 %v1009
        %1206 = vmatpush.msra.mxu0 %v1005
        %1207 = vmatpush.msra.mxu0 %v1001
        %1208 = vmatpush.msra.mxu0 %v997
        %1209 = vmatmul.f32.gmra.mxu0 %v917
        %v1210 = vpop.f32.mrf.mxu0
        %v1211 = vadd.f32 %v1170, %v1210
        %1212 = vmatmul.f32.gmra.mxu0 %v919
        %v1213 = vpop.f32.mrf.mxu0
        %v1214 = vadd.f32 %v1173, %v1213
        %1215 = vmatmul.f32.gmra.mxu0 %v921
        %v1216 = vpop.f32.mrf.mxu0
        %v1217 = vadd.f32 %v1176, %v1216
        %1218 = vmatmul.f32.gmra.mxu0 %v923
        %v1219 = vpop.f32.mrf.mxu0
        %v1220 = vadd.f32 %v1179, %v1219
        %1221 = vmatmul.f32.gmra.mxu0 %v925
        %v1222 = vpop.f32.mrf.mxu0
        %v1223 = vadd.f32 %v1182, %v1222
        %1224 = vmatmul.f32.gmra.mxu0 %v927
        %v1225 = vpop.f32.mrf.mxu0
        %v1226 = vadd.f32 %v1185, %v1225
        %1227 = vmatmul.f32.gmra.mxu0 %v929
        %v1228 = vpop.f32.mrf.mxu0
        %v1229 = vadd.f32 %v1188, %v1228
        %1230 = vmatmul.f32.gmra.mxu0 %v931
        %v1231 = vpop.f32.mrf.mxu0
        %v1232 = vadd.f32 %v1191, %v1231
        %1233 = vdwg.mxu0
        %1234 = vmatpush.msra.mxu0 %v994
        %1235 = vmatpush.msra.mxu0 %v990
        %1236 = vmatpush.msra.mxu0 %v986
        %1237 = vmatpush.msra.mxu0 %v982
        %1238 = vmatpush.msra.mxu0 %v978
        %1239 = vmatpush.msra.mxu0 %v974
        %1240 = vmatpush.msra.mxu0 %v970
        %1241 = vmatpush.msra.mxu0 %v966
        %1242 = vmatpush.msra.mxu0 %v962
        %1243 = vmatpush.msra.mxu0 %v958
        %1244 = vmatpush.msra.mxu0 %v954
        %1245 = vmatpush.msra.mxu0 %v950
        %1246 = vmatpush.msra.mxu0 %v946
        %1247 = vmatpush.msra.mxu0 %v942
        %1248 = vmatpush.msra.mxu0 %v938
        %1249 = vmatpush.msra.mxu0 %v934
        %1250 = vmatmul.f32.gmra.mxu0 %v916
        %v1251 = vpop.f32.mrf.mxu0
        %v1252 = vadd.f32 %v1064, %v1251
        %1253 = vmatmul.f32.gmra.mxu0 %v918
        %v1254 = vpop.f32.mrf.mxu0
        %v1255 = vadd.f32 %v1064, %v1254
        %1256 = vmatmul.f32.gmra.mxu0 %v920
        %v1257 = vpop.f32.mrf.mxu0
        %v1258 = vadd.f32 %v1064, %v1257
        %1259 = vmatmul.f32.gmra.mxu0 %v922
        %v1260 = vpop.f32.mrf.mxu0
        %v1261 = vadd.f32 %v1064, %v1260
        %1262 = vmatmul.f32.gmra.mxu0 %v924
        %v1263 = vpop.f32.mrf.mxu0
        %v1264 = vadd.f32 %v1064, %v1263
        %1265 = vmatmul.f32.gmra.mxu0 %v926
        %v1266 = vpop.f32.mrf.mxu0
        %v1267 = vadd.f32 %v1064, %v1266
        %1268 = vmatmul.f32.gmra.mxu0 %v928
        %v1269 = vpop.f32.mrf.mxu0
        %v1270 = vadd.f32 %v1064, %v1269
        %1271 = vmatmul.f32.gmra.mxu0 %v930
        %v1272 = vpop.f32.mrf.mxu0
        %v1273 = vadd.f32 %v1064, %v1272
        %1274 = vdwg.mxu0
        %1275 = vmatpush.msra.mxu0 %v1058
        %1276 = vmatpush.msra.mxu0 %v1054
        %1277 = vmatpush.msra.mxu0 %v1050
        %1278 = vmatpush.msra.mxu0 %v1046
        %1279 = vmatpush.msra.mxu0 %v1042
        %1280 = vmatpush.msra.mxu0 %v1038
        %1281 = vmatpush.msra.mxu0 %v1034
        %1282 = vmatpush.msra.mxu0 %v1030
        %1283 = vmatpush.msra.mxu0 %v1026
        %1284 = vmatpush.msra.mxu0 %v1022
        %1285 = vmatpush.msra.mxu0 %v1018
        %1286 = vmatpush.msra.mxu0 %v1014
        %1287 = vmatpush.msra.mxu0 %v1010
        %1288 = vmatpush.msra.mxu0 %v1006
        %1289 = vmatpush.msra.mxu0 %v1002
        %1290 = vmatpush.msra.mxu0 %v998
        %1291 = vmatmul.f32.gmra.mxu0 %v917
        %v1292 = vpop.f32.mrf.mxu0
        %v1293 = vadd.f32 %v1252, %v1292
        %1294 = vmatmul.f32.gmra.mxu0 %v919
        %v1295 = vpop.f32.mrf.mxu0
        %v1296 = vadd.f32 %v1255, %v1295
        %1297 = vmatmul.f32.gmra.mxu0 %v921
        %v1298 = vpop.f32.mrf.mxu0
        %v1299 = vadd.f32 %v1258, %v1298
        %1300 = vmatmul.f32.gmra.mxu0 %v923
        %v1301 = vpop.f32.mrf.mxu0
        %v1302 = vadd.f32 %v1261, %v1301
        %1303 = vmatmul.f32.gmra.mxu0 %v925
        %v1304 = vpop.f32.mrf.mxu0
        %v1305 = vadd.f32 %v1264, %v1304
        %1306 = vmatmul.f32.gmra.mxu0 %v927
        %v1307 = vpop.f32.mrf.mxu0
        %v1308 = vadd.f32 %v1267, %v1307
        %1309 = vmatmul.f32.gmra.mxu0 %v929
        %v1310 = vpop.f32.mrf.mxu0
        %v1311 = vadd.f32 %v1270, %v1310
        %1312 = vmatmul.f32.gmra.mxu0 %v931
        %v1313 = vpop.f32.mrf.mxu0
        %v1314 = vadd.f32 %v1273, %v1313
        %1315 = vdwg.mxu0
        %1316 = vmatpush.msra.mxu0 %v995
        %1317 = vmatpush.msra.mxu0 %v991
        %1318 = vmatpush.msra.mxu0 %v987
        %1319 = vmatpush.msra.mxu0 %v983
        %1320 = vmatpush.msra.mxu0 %v979
        %1321 = vmatpush.msra.mxu0 %v975
        %1322 = vmatpush.msra.mxu0 %v971
        %1323 = vmatpush.msra.mxu0 %v967
        %1324 = vmatpush.msra.mxu0 %v963
        %1325 = vmatpush.msra.mxu0 %v959
        %1326 = vmatpush.msra.mxu0 %v955
        %1327 = vmatpush.msra.mxu0 %v951
        %1328 = vmatpush.msra.mxu0 %v947
        %1329 = vmatpush.msra.mxu0 %v943
        %1330 = vmatpush.msra.mxu0 %v939
        %1331 = vmatpush.msra.mxu0 %v935
        %1332 = vmatmul.f32.gmra.mxu0 %v916
        %v1333 = vpop.f32.mrf.mxu0
        %v1334 = vadd.f32 %v1065, %v1333
        %1335 = vmatmul.f32.gmra.mxu0 %v918
        %v1336 = vpop.f32.mrf.mxu0
        %v1337 = vadd.f32 %v1065, %v1336
        %1338 = vmatmul.f32.gmra.mxu0 %v920
        %v1339 = vpop.f32.mrf.mxu0
        %v1340 = vadd.f32 %v1065, %v1339
        %1341 = vmatmul.f32.gmra.mxu0 %v922
        %v1342 = vpop.f32.mrf.mxu0
        %v1343 = vadd.f32 %v1065, %v1342
        %1344 = vmatmul.f32.gmra.mxu0 %v924
        %v1345 = vpop.f32.mrf.mxu0
        %v1346 = vadd.f32 %v1065, %v1345
        %1347 = vmatmul.f32.gmra.mxu0 %v926
        %v1348 = vpop.f32.mrf.mxu0
        %v1349 = vadd.f32 %v1065, %v1348
        %1350 = vmatmul.f32.gmra.mxu0 %v928
        %v1351 = vpop.f32.mrf.mxu0
        %v1352 = vadd.f32 %v1065, %v1351
        %1353 = vmatmul.f32.gmra.mxu0 %v930
        %v1354 = vpop.f32.mrf.mxu0
        %v1355 = vadd.f32 %v1065, %v1354
        %1356 = vdwg.mxu0
        %1357 = vmatpush.msra.mxu0 %v1059
        %1358 = vmatpush.msra.mxu0 %v1055
        %1359 = vmatpush.msra.mxu0 %v1051
        %1360 = vmatpush.msra.mxu0 %v1047
        %1361 = vmatpush.msra.mxu0 %v1043
        %1362 = vmatpush.msra.mxu0 %v1039
        %1363 = vmatpush.msra.mxu0 %v1035
        %1364 = vmatpush.msra.mxu0 %v1031
        %1365 = vmatpush.msra.mxu0 %v1027
        %1366 = vmatpush.msra.mxu0 %v1023
        %1367 = vmatpush.msra.mxu0 %v1019
        %1368 = vmatpush.msra.mxu0 %v1015
        %1369 = vmatpush.msra.mxu0 %v1011
        %1370 = vmatpush.msra.mxu0 %v1007
        %1371 = vmatpush.msra.mxu0 %v1003
        %1372 = vmatpush.msra.mxu0 %v999
        %1373 = vmatmul.f32.gmra.mxu0 %v917
        %v1374 = vpop.f32.mrf.mxu0
        %v1375 = vadd.f32 %v1334, %v1374
        %1376 = vmatmul.f32.gmra.mxu0 %v919
        %v1377 = vpop.f32.mrf.mxu0
        %v1378 = vadd.f32 %v1337, %v1377
        %1379 = vmatmul.f32.gmra.mxu0 %v921
        %v1380 = vpop.f32.mrf.mxu0
        %v1381 = vadd.f32 %v1340, %v1380
        %1382 = vmatmul.f32.gmra.mxu0 %v923
        %v1383 = vpop.f32.mrf.mxu0
        %v1384 = vadd.f32 %v1343, %v1383
        %1385 = vmatmul.f32.gmra.mxu0 %v925
        %v1386 = vpop.f32.mrf.mxu0
        %v1387 = vadd.f32 %v1346, %v1386
        %1388 = vmatmul.f32.gmra.mxu0 %v927
        %v1389 = vpop.f32.mrf.mxu0
        %v1390 = vadd.f32 %v1349, %v1389
        %1391 = vmatmul.f32.gmra.mxu0 %v929
        %v1392 = vpop.f32.mrf.mxu0
        %v1393 = vadd.f32 %v1352, %v1392
        %1394 = vmatmul.f32.gmra.mxu0 %v931
        %v1395 = vpop.f32.mrf.mxu0
        %v1396 = vadd.f32 %v1355, %v1395
        %1397 = vdwg.mxu0
        %v1398 = vmax.f32 %v1129, %v1132
        %v1399 = vmax.f32 %v1398, %v1135
        %v1400 = vmax.f32 %v1399, %v1138
        %v1401 = vmax.f32 %v1400, %v1141
        %v1402 = vmax.f32 %v1401, %v1144
        %v1403 = vmax.f32 %v1402, %v1147
        %v1404 = vmax.f32 %v1403, %v1150
        %v1405 = vrot.slane %v1404, 4
        %v1406 = vmax.f32 %v1404, %v1405
        %v1407 = vrot.slane %v1406, 2
        %v1408 = vmax.f32 %v1406, %v1407
        %v1409 = vrot.slane %v1408, 1
        %v1410 = vmax.f32 %v1408, %v1409
        %v1411 = vmax.f32 %v1211, %v1214
        %v1412 = vmax.f32 %v1411, %v1217
        %v1413 = vmax.f32 %v1412, %v1220
        %v1414 = vmax.f32 %v1413, %v1223
        %v1415 = vmax.f32 %v1414, %v1226
        %v1416 = vmax.f32 %v1415, %v1229
        %v1417 = vmax.f32 %v1416, %v1232
        %v1418 = vrot.slane %v1417, 4
        %v1419 = vmax.f32 %v1417, %v1418
        %v1420 = vrot.slane %v1419, 2
        %v1421 = vmax.f32 %v1419, %v1420
        %v1422 = vrot.slane %v1421, 1
        %v1423 = vmax.f32 %v1421, %v1422
        %v1424 = vmax.f32 %v1293, %v1296
        %v1425 = vmax.f32 %v1424, %v1299
        %v1426 = vmax.f32 %v1425, %v1302
        %v1427 = vmax.f32 %v1426, %v1305
        %v1428 = vmax.f32 %v1427, %v1308
        %v1429 = vmax.f32 %v1428, %v1311
        %v1430 = vmax.f32 %v1429, %v1314
        %v1431 = vrot.slane %v1430, 4
        %v1432 = vmax.f32 %v1430, %v1431
        %v1433 = vrot.slane %v1432, 2
        %v1434 = vmax.f32 %v1432, %v1433
        %v1435 = vrot.slane %v1434, 1
        %v1436 = vmax.f32 %v1434, %v1435
        %v1437 = vmax.f32 %v1375, %v1378
        %v1438 = vmax.f32 %v1437, %v1381
        %v1439 = vmax.f32 %v1438, %v1384
        %v1440 = vmax.f32 %v1439, %v1387
        %v1441 = vmax.f32 %v1440, %v1390
        %v1442 = vmax.f32 %v1441, %v1393
        %v1443 = vmax.f32 %v1442, %v1396
        %v1444 = vrot.slane %v1443, 4
        %v1445 = vmax.f32 %v1443, %v1444
        %v1446 = vrot.slane %v1445, 2
        %v1447 = vmax.f32 %v1445, %v1446
        %v1448 = vrot.slane %v1447, 1
        %v1449 = vmax.f32 %v1447, %v1448
        %v1450 = vld [vmem:[#allocation2] sm:$0xf]
        %v1455 = vrot.slane %v1423, 7
        %v1456 = vrot.slane %v1436, 6
        %v1457 = vrot.slane %v1449, 5
        %vm1458 = vcmask 1040384
        %v1459 = vsel %vm1458, %v1410, %v1455
        %vm1460 = vcmask 1042434
        %v1461 = vsel %vm1460, %v1456, %v1457
        %vm1462 = vcmask 1041408
        %v1463 = vsel %vm1462, %v1459, %v1461
        %v1465 = vmax.f32 %v1450, %v1463
        %v1466 = vlaneseq
        %vm1467 = vcmp.ge.s32.totalorder %v1466, 0
        %vm1468 = vcmp.lt.s32.totalorder %v1466, 512
        %vm1469 = vmand %vm1467, %vm1468
        %1470 = vst.msk [vmem:[#allocation2] sm:$0xf] %vm1469, %v1465
        // Predicated region
        $region109: #{forward.1} parent=75 // pred_check
          %p1471 = pneg %p611
        $region110: #{forward.1} parent=75 // pred_check_branch
          %1473 = sbr.rel (%p1471) target = $region112
        $region111: #{forward.1} parent=75 // pred_region
          %v1474 = vld [vmem:[#allocation2] sm:$0xf]
          %v1475 = vld [vmem:[#allocation7] sm:$0xff]
          %v1476 = vld [vmem:[#allocation7 + $0x8] sm:$0xff]
          %v1477 = vld [vmem:[#allocation7 + $0x10] sm:$0xff]
          %v1478 = vld [vmem:[#allocation7 + $0x18] sm:$0xff]
          %v1479 = vld [vmem:[#allocation7 + $0x20] sm:$0xff]
          %v1480 = vld [vmem:[#allocation7 + $0x28] sm:$0xff]
          %v1481 = vld [vmem:[#allocation7 + $0x30] sm:$0xff]
          %v1482 = vld [vmem:[#allocation7 + $0x38] sm:$0xff]
          %v1483 = vld [vmem:[#allocation7 + $0x40] sm:$0xff]
          %v1484 = vld [vmem:[#allocation7 + $0x48] sm:$0xff]
          %v1485 = vld [vmem:[#allocation7 + $0x50] sm:$0xff]
          %v1486 = vld [vmem:[#allocation7 + $0x58] sm:$0xff]
          %v1487 = vld [vmem:[#allocation7 + $0x60] sm:$0xff]
          %v1488 = vld [vmem:[#allocation7 + $0x68] sm:$0xff]
          %v1489 = vld [vmem:[#allocation7 + $0x70] sm:$0xff]
          %v1490 = vld [vmem:[#allocation7 + $0x78] sm:$0xff]
          %v1491 = vld [vmem:[#allocation7 + $0x80] sm:$0xff]
          %v1492 = vld [vmem:[#allocation7 + $0x88] sm:$0xff]
          %v1493 = vld [vmem:[#allocation7 + $0x90] sm:$0xff]
          %v1494 = vld [vmem:[#allocation7 + $0x98] sm:$0xff]
          %v1495 = vld [vmem:[#allocation7 + $0xa0] sm:$0xff]
          %v1496 = vld [vmem:[#allocation7 + $0xa8] sm:$0xff]
          %v1497 = vld [vmem:[#allocation7 + $0xb0] sm:$0xff]
          %v1498 = vld [vmem:[#allocation7 + $0xb8] sm:$0xff]
          %v1499 = vld [vmem:[#allocation7 + $0xc0] sm:$0xff]
          %v1500 = vld [vmem:[#allocation7 + $0xc8] sm:$0xff]
          %v1501 = vld [vmem:[#allocation7 + $0xd0] sm:$0xff]
          %v1502 = vld [vmem:[#allocation7 + $0xd8] sm:$0xff]
          %v1503 = vld [vmem:[#allocation7 + $0xe0] sm:$0xff]
          %v1504 = vld [vmem:[#allocation7 + $0xe8] sm:$0xff]
          %v1505 = vld [vmem:[#allocation7 + $0xf0] sm:$0xff]
          %v1506 = vld [vmem:[#allocation7 + $0xf8] sm:$0xff]
          %v1507 = vld [vmem:[#allocation7 + $0x100] sm:$0xff]
          %v1508 = vld [vmem:[#allocation7 + $0x108] sm:$0xff]
          %v1509 = vld [vmem:[#allocation7 + $0x110] sm:$0xff]
          %v1510 = vld [vmem:[#allocation7 + $0x118] sm:$0xff]
          %v1511 = vld [vmem:[#allocation7 + $0x120] sm:$0xff]
          %v1512 = vld [vmem:[#allocation7 + $0x128] sm:$0xff]
          %v1513 = vld [vmem:[#allocation7 + $0x130] sm:$0xff]
          %v1514 = vld [vmem:[#allocation7 + $0x138] sm:$0xff]
          %v1515 = vld [vmem:[#allocation7 + $0x140] sm:$0xff]
          %v1516 = vld [vmem:[#allocation7 + $0x148] sm:$0xff]
          %v1517 = vld [vmem:[#allocation7 + $0x150] sm:$0xff]
          %v1518 = vld [vmem:[#allocation7 + $0x158] sm:$0xff]
          %v1519 = vld [vmem:[#allocation7 + $0x160] sm:$0xff]
          %v1520 = vld [vmem:[#allocation7 + $0x168] sm:$0xff]
          %v1521 = vld [vmem:[#allocation7 + $0x170] sm:$0xff]
          %v1522 = vld [vmem:[#allocation7 + $0x178] sm:$0xff]
          %v1523 = vld [vmem:[#allocation7 + $0x180] sm:$0xff]
          %v1524 = vld [vmem:[#allocation7 + $0x188] sm:$0xff]
          %v1525 = vld [vmem:[#allocation7 + $0x190] sm:$0xff]
          %v1526 = vld [vmem:[#allocation7 + $0x198] sm:$0xff]
          %v1527 = vld [vmem:[#allocation7 + $0x1a0] sm:$0xff]
          %v1528 = vld [vmem:[#allocation7 + $0x1a8] sm:$0xff]
          %v1529 = vld [vmem:[#allocation7 + $0x1b0] sm:$0xff]
          %v1530 = vld [vmem:[#allocation7 + $0x1b8] sm:$0xff]
          %v1531 = vld [vmem:[#allocation7 + $0x1c0] sm:$0xff]
          %v1532 = vld [vmem:[#allocation7 + $0x1c8] sm:$0xff]
          %v1533 = vld [vmem:[#allocation7 + $0x1d0] sm:$0xff]
          %v1534 = vld [vmem:[#allocation7 + $0x1d8] sm:$0xff]
          %v1535 = vld [vmem:[#allocation7 + $0x1e0] sm:$0xff]
          %v1536 = vld [vmem:[#allocation7 + $0x1e8] sm:$0xff]
          %v1537 = vld [vmem:[#allocation7 + $0x1f0] sm:$0xff]
          %v1538 = vld [vmem:[#allocation7 + $0x1f8] sm:$0xff]
          %v1539 = vld [vmem:[#allocation7 + $0x200] sm:$0xff]
          %v1540 = vld [vmem:[#allocation7 + $0x208] sm:$0xff]
          %v1541 = vld [vmem:[#allocation7 + $0x210] sm:$0xff]
          %v1542 = vld [vmem:[#allocation7 + $0x218] sm:$0xff]
          %v1543 = vld [vmem:[#allocation7 + $0x220] sm:$0xff]
          %v1544 = vld [vmem:[#allocation7 + $0x228] sm:$0xff]
          %v1545 = vld [vmem:[#allocation7 + $0x230] sm:$0xff]
          %v1546 = vld [vmem:[#allocation7 + $0x238] sm:$0xff]
          %v1547 = vld [vmem:[#allocation7 + $0x240] sm:$0xff]
          %v1548 = vld [vmem:[#allocation7 + $0x248] sm:$0xff]
          %v1549 = vld [vmem:[#allocation7 + $0x250] sm:$0xff]
          %v1550 = vld [vmem:[#allocation7 + $0x258] sm:$0xff]
          %v1551 = vld [vmem:[#allocation7 + $0x260] sm:$0xff]
          %v1552 = vld [vmem:[#allocation7 + $0x268] sm:$0xff]
          %v1553 = vld [vmem:[#allocation7 + $0x270] sm:$0xff]
          %v1554 = vld [vmem:[#allocation7 + $0x278] sm:$0xff]
          %v1555 = vld [vmem:[#allocation7 + $0x280] sm:$0xff]
          %v1556 = vld [vmem:[#allocation7 + $0x288] sm:$0xff]
          %v1557 = vld [vmem:[#allocation7 + $0x290] sm:$0xff]
          %v1558 = vld [vmem:[#allocation7 + $0x298] sm:$0xff]
          %v1559 = vld [vmem:[#allocation7 + $0x2a0] sm:$0xff]
          %v1560 = vld [vmem:[#allocation7 + $0x2a8] sm:$0xff]
          %v1561 = vld [vmem:[#allocation7 + $0x2b0] sm:$0xff]
          %v1562 = vld [vmem:[#allocation7 + $0x2b8] sm:$0xff]
          %v1563 = vld [vmem:[#allocation7 + $0x2c0] sm:$0xff]
          %v1564 = vld [vmem:[#allocation7 + $0x2c8] sm:$0xff]
          %v1565 = vld [vmem:[#allocation7 + $0x2d0] sm:$0xff]
          %v1566 = vld [vmem:[#allocation7 + $0x2d8] sm:$0xff]
          %v1567 = vld [vmem:[#allocation7 + $0x2e0] sm:$0xff]
          %v1568 = vld [vmem:[#allocation7 + $0x2e8] sm:$0xff]
          %v1569 = vld [vmem:[#allocation7 + $0x2f0] sm:$0xff]
          %v1570 = vld [vmem:[#allocation7 + $0x2f8] sm:$0xff]
          %v1571 = vld [vmem:[#allocation7 + $0x300] sm:$0xff]
          %v1572 = vld [vmem:[#allocation7 + $0x308] sm:$0xff]
          %v1573 = vld [vmem:[#allocation7 + $0x310] sm:$0xff]
          %v1574 = vld [vmem:[#allocation7 + $0x318] sm:$0xff]
          %v1575 = vld [vmem:[#allocation7 + $0x320] sm:$0xff]
          %v1576 = vld [vmem:[#allocation7 + $0x328] sm:$0xff]
          %v1577 = vld [vmem:[#allocation7 + $0x330] sm:$0xff]
          %v1578 = vld [vmem:[#allocation7 + $0x338] sm:$0xff]
          %v1579 = vld [vmem:[#allocation7 + $0x340] sm:$0xff]
          %v1580 = vld [vmem:[#allocation7 + $0x348] sm:$0xff]
          %v1581 = vld [vmem:[#allocation7 + $0x350] sm:$0xff]
          %v1582 = vld [vmem:[#allocation7 + $0x358] sm:$0xff]
          %v1583 = vld [vmem:[#allocation7 + $0x360] sm:$0xff]
          %v1584 = vld [vmem:[#allocation7 + $0x368] sm:$0xff]
          %v1585 = vld [vmem:[#allocation7 + $0x370] sm:$0xff]
          %v1586 = vld [vmem:[#allocation7 + $0x378] sm:$0xff]
          %v1587 = vld [vmem:[#allocation7 + $0x380] sm:$0xff]
          %v1588 = vld [vmem:[#allocation7 + $0x388] sm:$0xff]
          %v1589 = vld [vmem:[#allocation7 + $0x390] sm:$0xff]
          %v1590 = vld [vmem:[#allocation7 + $0x398] sm:$0xff]
          %v1591 = vld [vmem:[#allocation7 + $0x3a0] sm:$0xff]
          %v1592 = vld [vmem:[#allocation7 + $0x3a8] sm:$0xff]
          %v1593 = vld [vmem:[#allocation7 + $0x3b0] sm:$0xff]
          %v1594 = vld [vmem:[#allocation7 + $0x3b8] sm:$0xff]
          %v1595 = vld [vmem:[#allocation7 + $0x3c0] sm:$0xff]
          %v1596 = vld [vmem:[#allocation7 + $0x3c8] sm:$0xff]
          %v1597 = vld [vmem:[#allocation7 + $0x3d0] sm:$0xff]
          %v1598 = vld [vmem:[#allocation7 + $0x3d8] sm:$0xff]
          %v1599 = vld [vmem:[#allocation7 + $0x3e0] sm:$0xff]
          %v1600 = vld [vmem:[#allocation7 + $0x3e8] sm:$0xff]
          %v1601 = vld [vmem:[#allocation7 + $0x3f0] sm:$0xff]
          %v1602 = vld [vmem:[#allocation7 + $0x3f8] sm:$0xff]
          %v1603 = vld [vmem:[#allocation10] sm:$0x3]
          %v1605 = vperm.slane %v1474, 0
          %v1606 = vperm.slane %v1474, 1
          %v1607 = vperm.slane %v1474, 2
          %v1608 = vperm.slane %v1474, 3
          %v1614 = vperm.slane %v1603, 0
          %v1615 = vperm.slane %v1603, 1
          %1618 = vmatpush.msra.mxu0 %v1505
          %1619 = vmatpush.msra.mxu0 %v1503
          %1620 = vmatpush.msra.mxu0 %v1501
          %1621 = vmatpush.msra.mxu0 %v1499
          %1622 = vmatpush.msra.mxu0 %v1497
          %1623 = vmatpush.msra.mxu0 %v1495
          %1624 = vmatpush.msra.mxu0 %v1493
          %1625 = vmatpush.msra.mxu0 %v1491
          %1626 = vmatpush.msra.mxu0 %v1489
          %1627 = vmatpush.msra.mxu0 %v1487
          %1628 = vmatpush.msra.mxu0 %v1485
          %1629 = vmatpush.msra.mxu0 %v1483
          %1630 = vmatpush.msra.mxu0 %v1481
          %1631 = vmatpush.msra.mxu0 %v1479
          %1632 = vmatpush.msra.mxu0 %v1477
          %1633 = vmatpush.msra.mxu0 %v1475
          %1634 = vmatmul.f32.gmra.mxu0 %v1605
          %v1635 = vpop.f32.mrf.mxu0
          %v1636 = vadd.f32 %v1614, %v1635
          %1637 = vdwg.mxu0
          %1638 = vmatpush.msra.mxu0 %v1537
          %1639 = vmatpush.msra.mxu0 %v1535
          %1640 = vmatpush.msra.mxu0 %v1533
          %1641 = vmatpush.msra.mxu0 %v1531
          %1642 = vmatpush.msra.mxu0 %v1529
          %1643 = vmatpush.msra.mxu0 %v1527
          %1644 = vmatpush.msra.mxu0 %v1525
          %1645 = vmatpush.msra.mxu0 %v1523
          %1646 = vmatpush.msra.mxu0 %v1521
          %1647 = vmatpush.msra.mxu0 %v1519
          %1648 = vmatpush.msra.mxu0 %v1517
          %1649 = vmatpush.msra.mxu0 %v1515
          %1650 = vmatpush.msra.mxu0 %v1513
          %1651 = vmatpush.msra.mxu0 %v1511
          %1652 = vmatpush.msra.mxu0 %v1509
          %1653 = vmatpush.msra.mxu0 %v1507
          %1654 = vmatmul.f32.gmra.mxu0 %v1606
          %v1655 = vpop.f32.mrf.mxu0
          %v1656 = vadd.f32 %v1636, %v1655
          %1657 = vdwg.mxu0
          %1658 = vmatpush.msra.mxu0 %v1569
          %1659 = vmatpush.msra.mxu0 %v1567
          %1660 = vmatpush.msra.mxu0 %v1565
          %1661 = vmatpush.msra.mxu0 %v1563
          %1662 = vmatpush.msra.mxu0 %v1561
          %1663 = vmatpush.msra.mxu0 %v1559
          %1664 = vmatpush.msra.mxu0 %v1557
          %1665 = vmatpush.msra.mxu0 %v1555
          %1666 = vmatpush.msra.mxu0 %v1553
          %1667 = vmatpush.msra.mxu0 %v1551
          %1668 = vmatpush.msra.mxu0 %v1549
          %1669 = vmatpush.msra.mxu0 %v1547
          %1670 = vmatpush.msra.mxu0 %v1545
          %1671 = vmatpush.msra.mxu0 %v1543
          %1672 = vmatpush.msra.mxu0 %v1541
          %1673 = vmatpush.msra.mxu0 %v1539
          %1674 = vmatmul.f32.gmra.mxu0 %v1607
          %v1675 = vpop.f32.mrf.mxu0
          %v1676 = vadd.f32 %v1656, %v1675
          %1677 = vdwg.mxu0
          %1678 = vmatpush.msra.mxu0 %v1601
          %1679 = vmatpush.msra.mxu0 %v1599
          %1680 = vmatpush.msra.mxu0 %v1597
          %1681 = vmatpush.msra.mxu0 %v1595
          %1682 = vmatpush.msra.mxu0 %v1593
          %1683 = vmatpush.msra.mxu0 %v1591
          %1684 = vmatpush.msra.mxu0 %v1589
          %1685 = vmatpush.msra.mxu0 %v1587
          %1686 = vmatpush.msra.mxu0 %v1585
          %1687 = vmatpush.msra.mxu0 %v1583
          %1688 = vmatpush.msra.mxu0 %v1581
          %1689 = vmatpush.msra.mxu0 %v1579
          %1690 = vmatpush.msra.mxu0 %v1577
          %1691 = vmatpush.msra.mxu0 %v1575
          %1692 = vmatpush.msra.mxu0 %v1573
          %1693 = vmatpush.msra.mxu0 %v1571
          %1694 = vmatmul.f32.gmra.mxu0 %v1608
          %v1695 = vpop.f32.mrf.mxu0
          %v1696 = vadd.f32 %v1676, %v1695
          %1697 = vdwg.mxu0
          %1698 = vmatpush.msra.mxu0 %v1506
          %1699 = vmatpush.msra.mxu0 %v1504
          %1700 = vmatpush.msra.mxu0 %v1502
          %1701 = vmatpush.msra.mxu0 %v1500
          %1702 = vmatpush.msra.mxu0 %v1498
          %1703 = vmatpush.msra.mxu0 %v1496
          %1704 = vmatpush.msra.mxu0 %v1494
          %1705 = vmatpush.msra.mxu0 %v1492
          %1706 = vmatpush.msra.mxu0 %v1490
          %1707 = vmatpush.msra.mxu0 %v1488
          %1708 = vmatpush.msra.mxu0 %v1486
          %1709 = vmatpush.msra.mxu0 %v1484
          %1710 = vmatpush.msra.mxu0 %v1482
          %1711 = vmatpush.msra.mxu0 %v1480
          %1712 = vmatpush.msra.mxu0 %v1478
          %1713 = vmatpush.msra.mxu0 %v1476
          %1714 = vmatmul.f32.gmra.mxu0 %v1605
          %v1715 = vpop.f32.mrf.mxu0
          %v1716 = vadd.f32 %v1615, %v1715
          %1717 = vdwg.mxu0
          %1718 = vmatpush.msra.mxu0 %v1538
          %1719 = vmatpush.msra.mxu0 %v1536
          %1720 = vmatpush.msra.mxu0 %v1534
          %1721 = vmatpush.msra.mxu0 %v1532
          %1722 = vmatpush.msra.mxu0 %v1530
          %1723 = vmatpush.msra.mxu0 %v1528
          %1724 = vmatpush.msra.mxu0 %v1526
          %1725 = vmatpush.msra.mxu0 %v1524
          %1726 = vmatpush.msra.mxu0 %v1522
          %1727 = vmatpush.msra.mxu0 %v1520
          %1728 = vmatpush.msra.mxu0 %v1518
          %1729 = vmatpush.msra.mxu0 %v1516
          %1730 = vmatpush.msra.mxu0 %v1514
          %1731 = vmatpush.msra.mxu0 %v1512
          %1732 = vmatpush.msra.mxu0 %v1510
          %1733 = vmatpush.msra.mxu0 %v1508
          %1734 = vmatmul.f32.gmra.mxu0 %v1606
          %v1735 = vpop.f32.mrf.mxu0
          %v1736 = vadd.f32 %v1716, %v1735
          %1737 = vdwg.mxu0
          %1738 = vmatpush.msra.mxu0 %v1570
          %1739 = vmatpush.msra.mxu0 %v1568
          %1740 = vmatpush.msra.mxu0 %v1566
          %1741 = vmatpush.msra.mxu0 %v1564
          %1742 = vmatpush.msra.mxu0 %v1562
          %1743 = vmatpush.msra.mxu0 %v1560
          %1744 = vmatpush.msra.mxu0 %v1558
          %1745 = vmatpush.msra.mxu0 %v1556
          %1746 = vmatpush.msra.mxu0 %v1554
          %1747 = vmatpush.msra.mxu0 %v1552
          %1748 = vmatpush.msra.mxu0 %v1550
          %1749 = vmatpush.msra.mxu0 %v1548
          %1750 = vmatpush.msra.mxu0 %v1546
          %1751 = vmatpush.msra.mxu0 %v1544
          %1752 = vmatpush.msra.mxu0 %v1542
          %1753 = vmatpush.msra.mxu0 %v1540
          %1754 = vmatmul.f32.gmra.mxu0 %v1607
          %v1755 = vpop.f32.mrf.mxu0
          %v1756 = vadd.f32 %v1736, %v1755
          %1757 = vdwg.mxu0
          %1758 = vmatpush.msra.mxu0 %v1602
          %1759 = vmatpush.msra.mxu0 %v1600
          %1760 = vmatpush.msra.mxu0 %v1598
          %1761 = vmatpush.msra.mxu0 %v1596
          %1762 = vmatpush.msra.mxu0 %v1594
          %1763 = vmatpush.msra.mxu0 %v1592
          %1764 = vmatpush.msra.mxu0 %v1590
          %1765 = vmatpush.msra.mxu0 %v1588
          %1766 = vmatpush.msra.mxu0 %v1586
          %1767 = vmatpush.msra.mxu0 %v1584
          %1768 = vmatpush.msra.mxu0 %v1582
          %1769 = vmatpush.msra.mxu0 %v1580
          %1770 = vmatpush.msra.mxu0 %v1578
          %1771 = vmatpush.msra.mxu0 %v1576
          %1772 = vmatpush.msra.mxu0 %v1574
          %1773 = vmatpush.msra.mxu0 %v1572
          %1774 = vmatmul.f32.gmra.mxu0 %v1608
          %v1775 = vpop.f32.mrf.mxu0
          %v1776 = vadd.f32 %v1756, %v1775
          %1777 = vdwg.mxu0
          %s1778 = sld [smem:[#allocation4 + %s42]]
          %s1779 = sshra.s32 %s1778, 3
          %s1780 = sand.u32 %s1778, 7
          %s1781 = sshra.s32 %s1778, 3
          %s1782 = sand.u32 %s1778, 7
          %s1783 = smul.u32 %s1779, 2
          %s1784 = smul.u32 %s1783, 8
          %s1785 = sadd.s32 %s1784, %s1782
          %s1786 = scalar_lea.vmem [#allocation9], %s1785
          %v1787 = vld [vmem:[%s1786] ss:$8 sm:$0x3]
          %v1789 = vperm.slane %v1787, 0
          %v1790 = vperm.slane %v1787, 1
          %v1793 = vadd.f32 %v1696, %v1789
          %v1794 = vadd.f32 %v1776, %v1790
          %v1795 = vmax.f32 %v1793, 0.0
          %v1796 = vmax.f32 %v1794, 0.0
          %v1797 = vld [vmem:[#allocation12] sm:$0xff]
          %v1798 = vld [vmem:[#allocation12 + $0x8] sm:$0xff]
          %v1799 = vld [vmem:[#allocation12 + $0x10] sm:$0xff]
          %v1800 = vld [vmem:[#allocation12 + $0x18] sm:$0xff]
          %v1801 = vld [vmem:[#allocation12 + $0x20] sm:$0xff]
          %v1802 = vld [vmem:[#allocation12 + $0x28] sm:$0xff]
          %v1803 = vld [vmem:[#allocation12 + $0x30] sm:$0xff]
          %v1804 = vld [vmem:[#allocation12 + $0x38] sm:$0xff]
          %v1805 = vld [vmem:[#allocation12 + $0x40] sm:$0xff]
          %v1806 = vld [vmem:[#allocation12 + $0x48] sm:$0xff]
          %v1807 = vld [vmem:[#allocation12 + $0x50] sm:$0xff]
          %v1808 = vld [vmem:[#allocation12 + $0x58] sm:$0xff]
          %v1809 = vld [vmem:[#allocation12 + $0x60] sm:$0xff]
          %v1810 = vld [vmem:[#allocation12 + $0x68] sm:$0xff]
          %v1811 = vld [vmem:[#allocation12 + $0x70] sm:$0xff]
          %v1812 = vld [vmem:[#allocation12 + $0x78] sm:$0xff]
          %v1813 = vld [vmem:[#allocation12 + $0x80] sm:$0xff]
          %v1814 = vld [vmem:[#allocation12 + $0x88] sm:$0xff]
          %v1815 = vld [vmem:[#allocation12 + $0x90] sm:$0xff]
          %v1816 = vld [vmem:[#allocation12 + $0x98] sm:$0xff]
          %v1817 = vld [vmem:[#allocation12 + $0xa0] sm:$0xff]
          %v1818 = vld [vmem:[#allocation12 + $0xa8] sm:$0xff]
          %v1819 = vld [vmem:[#allocation12 + $0xb0] sm:$0xff]
          %v1820 = vld [vmem:[#allocation12 + $0xb8] sm:$0xff]
          %v1821 = vld [vmem:[#allocation12 + $0xc0] sm:$0xff]
          %v1822 = vld [vmem:[#allocation12 + $0xc8] sm:$0xff]
          %v1823 = vld [vmem:[#allocation12 + $0xd0] sm:$0xff]
          %v1824 = vld [vmem:[#allocation12 + $0xd8] sm:$0xff]
          %v1825 = vld [vmem:[#allocation12 + $0xe0] sm:$0xff]
          %v1826 = vld [vmem:[#allocation12 + $0xe8] sm:$0xff]
          %v1827 = vld [vmem:[#allocation12 + $0xf0] sm:$0xff]
          %v1828 = vld [vmem:[#allocation12 + $0xf8] sm:$0xff]
          %v1829 = vld [vmem:[#allocation13] sm:$0x1]
          %1830 = vmatpush.msra.mxu0 %v1812
          %1831 = vmatpush.msra.mxu0 %v1811
          %1832 = vmatpush.msra.mxu0 %v1810
          %1833 = vmatpush.msra.mxu0 %v1809
          %1834 = vmatpush.msra.mxu0 %v1808
          %1835 = vmatpush.msra.mxu0 %v1807
          %1836 = vmatpush.msra.mxu0 %v1806
          %1837 = vmatpush.msra.mxu0 %v1805
          %1838 = vmatpush.msra.mxu0 %v1804
          %1839 = vmatpush.msra.mxu0 %v1803
          %1840 = vmatpush.msra.mxu0 %v1802
          %1841 = vmatpush.msra.mxu0 %v1801
          %1842 = vmatpush.msra.mxu0 %v1800
          %1843 = vmatpush.msra.mxu0 %v1799
          %1844 = vmatpush.msra.mxu0 %v1798
          %1845 = vmatpush.msra.mxu0 %v1797
          %1846 = vmatmul.f32.gmra.mxu0 %v1795
          %v1847 = vpop.f32.mrf.mxu0
          %v1848 = vadd.f32 %v1829, %v1847
          %1849 = vdwg.mxu0
          %1850 = vmatpush.msra.mxu0 %v1828
          %1851 = vmatpush.msra.mxu0 %v1827
          %1852 = vmatpush.msra.mxu0 %v1826
          %1853 = vmatpush.msra.mxu0 %v1825
          %1854 = vmatpush.msra.mxu0 %v1824
          %1855 = vmatpush.msra.mxu0 %v1823
          %1856 = vmatpush.msra.mxu0 %v1822
          %1857 = vmatpush.msra.mxu0 %v1821
          %1858 = vmatpush.msra.mxu0 %v1820
          %1859 = vmatpush.msra.mxu0 %v1819
          %1860 = vmatpush.msra.mxu0 %v1818
          %1861 = vmatpush.msra.mxu0 %v1817
          %1862 = vmatpush.msra.mxu0 %v1816
          %1863 = vmatpush.msra.mxu0 %v1815
          %1864 = vmatpush.msra.mxu0 %v1814
          %1865 = vmatpush.msra.mxu0 %v1813
          %1866 = vmatmul.f32.gmra.mxu0 %v1796
          %v1867 = vpop.f32.mrf.mxu0
          %v1868 = vadd.f32 %v1848, %v1867
          %1869 = vdwg.mxu0
          %v1870 = vld [vmem:[%s13] sm:$0xff]
          %v1871 = vld [vmem:[%s13 + $0x8] sm:$0xff]
          %v1872 = vld [vmem:[%s13 + $0x10] sm:$0xff]
          %v1873 = vld [vmem:[%s13 + $0x18] sm:$0xff]
          %v1874 = vld [vmem:[%s13 + $0x20] sm:$0xff]
          %v1875 = vld [vmem:[%s13 + $0x28] sm:$0xff]
          %v1876 = vld [vmem:[%s13 + $0x30] sm:$0xff]
          %v1877 = vld [vmem:[%s13 + $0x38] sm:$0xff]
          %v1878 = vld [vmem:[%s13 + $0x40] sm:$0xff]
          %v1879 = vld [vmem:[%s13 + $0x48] sm:$0xff]
          %v1880 = vld [vmem:[%s13 + $0x50] sm:$0xff]
          %v1881 = vld [vmem:[%s13 + $0x58] sm:$0xff]
          %v1882 = vld [vmem:[%s13 + $0x60] sm:$0xff]
          %v1883 = vld [vmem:[%s13 + $0x68] sm:$0xff]
          %v1884 = vld [vmem:[%s13 + $0x70] sm:$0xff]
          %v1885 = vld [vmem:[%s13 + $0x78] sm:$0xff]
          %v1886 = vld [vmem:[#allocation15] sm:$0x1]
          %1887 = vmatpush.msra.mxu0 %v1885
          %1888 = vmatpush.msra.mxu0 %v1884
          %1889 = vmatpush.msra.mxu0 %v1883
          %1890 = vmatpush.msra.mxu0 %v1882
          %1891 = vmatpush.msra.mxu0 %v1881
          %1892 = vmatpush.msra.mxu0 %v1880
          %1893 = vmatpush.msra.mxu0 %v1879
          %1894 = vmatpush.msra.mxu0 %v1878
          %1895 = vmatpush.msra.mxu0 %v1877
          %1896 = vmatpush.msra.mxu0 %v1876
          %1897 = vmatpush.msra.mxu0 %v1875
          %1898 = vmatpush.msra.mxu0 %v1874
          %1899 = vmatpush.msra.mxu0 %v1873
          %1900 = vmatpush.msra.mxu0 %v1872
          %1901 = vmatpush.msra.mxu0 %v1871
          %1902 = vmatpush.msra.mxu0 %v1870
          %1903 = vmatmul.f32.gmra.mxu0 %v1868
          %v1904 = vpop.f32.mrf.mxu0
          %v1905 = vadd.f32 %v1886, %v1904
          %1906 = vdwg.mxu0
          %vm1907 = vcmask 90112
          %1908 = vst.msk [vmem:[%s610] sm:$0x1] %vm1907, %v1905
        $region112: #{forward.1} parent=75 // pred_fallthru
          _
        %p1909 = scmp.lt.s32.totalorder %s42, 1
        %s1910 = scalar_select %p1909, %s42, 1
        %s1911 = scalar_lea.vmem %s15, %s1910
        // Predicated region
        $region113: #{forward.1} parent=75 // pred_check
          %p1912 = pneg %p369
        $region114: #{forward.1} parent=75 // pred_check_branch
          %1914 = sbr.rel (%p1912) target = $region116
        $region115: #{forward.1} parent=75 // pred_region
          _
        $region116: #{forward.1} parent=75 // pred_fallthru
          _
      $region76: #{forward.1} parent=5 // pred_fallthru
        _
      %p1915 = scmp.le.s32.totalorder 2, %s33
      // Predicated region
      $region117: #{forward.1} parent=5 // pred_check
        %p1916 = pneg %p1915
      $region118: #{forward.1} parent=5 // pred_check_branch
        %1918 = sbr.rel (%p1916) target = $region120
      $region119: #{forward.1} parent=5 // pred_region
        %s1919 = ssub.s32 %s33, 2
        // Predicated region
        $region121: #{forward.1} parent=119 // pred_check
          %p1920 = pneg %p375
        $region122: #{forward.1} parent=119 // pred_check_branch
          %1922 = sbr.rel (%p1920) target = $region124
        $region123: #{forward.1} parent=119 // pred_region
          %p1923 = scmp.lt.s32.totalorder %s44, 1
          %s1924 = scalar_select %p1923, %s44, 1
          %s1925 = scalar_lea.vmem %s15, %s1924
        $region124: #{forward.1} parent=119 // pred_fallthru
          _
      $region120: #{forward.1} parent=5 // pred_fallthru
        _
    $region6: #{forward.1} parent=1 // loop_footer
      %s37 = sadd.s32 1, %s33
    $region7: #{forward.1} parent=1 // loop_footer_branch
      %32 = sbr.rel target = $region3
    $region8: #{forward.1} parent=1 // loop_exit
      _
    %1926 = vsyncpa [#allocation6], 1
    %s1927 = scalar_lea.sflag [#allocation6], 1
    %1928 = vsyncpa %s1927, 1
    %1929 = vsyncpa [#allocation8], 1
    %1930 = vsyncpa [#allocation11], 1
    %1931 = vsyncpa [#allocation14], 1

</llo_original>
